<compile_context>
chip_gen: v7x
topology: tpu7x:2x2x1
jax: 0.10.0
libtpu: 0.0.40
codegen_flags: <defaults>
</compile_context>

<pallas_src>
import functools

import jax
import jax.numpy as jnp
from jax import lax
from jax.experimental import pallas as pl
from jax.experimental.pallas import tpu as pltpu


def _block_kernel(x_ref, w1_ref, b1_ref, w2_ref, b2_ref, o_ref, h1_ref, *, W):
    """Fused conv1(3x3) + bias + ReLU + conv2(3x3) + bias for one batch element.

    x_ref : (1, Cin_p, Lx_p)        flat NCHW image, bf16, zero-padded lanes/channels
    w1_ref: (9, Cout1_p, Cin_p)     conv1 weights, tap-major leading axis, bf16
    b1_ref: (Cout1_p, 1)            f32
    w2_ref: (9, Cout2_p, Cout1_p)   conv2 weights, bf16
    b2_ref: (Cout2_p, 1)            f32
    o_ref : (1, Cout2_p, L2_p)      flat conv2 output (junk lanes sliced by wrapper)
    h1_ref: (Cout1_p, L1_p)         VMEM scratch: relu(conv1(x)), bf16, never hits HBM
    """
    L1 = h1_ref.shape[1]
    L2 = o_ref.shape[2]

    def conv3x3(w_ref, rhs_slice, out_len):
        # 9 accumulating MXU matmuls; a (kh, kw) tap of the 3x3 stencil is a
        # static lane offset of kh*W + kw in flat row-major index space.
        acc = None
        for kh in range(3):
            for kw in range(3):
                t = kh * 3 + kw
                d = jnp.dot(w_ref[t], rhs_slice(kh * W + kw, out_len),
                            preferred_element_type=jnp.float32)
                acc = d if acc is None else acc + d
        return acc

    # conv1 + bias + ReLU (f32 math), intermediate stored bf16 in VMEM.
    acc1 = conv3x3(w1_ref, lambda off, n: x_ref[0, :, pl.ds(off, n)], L1)
    h1_ref[...] = jnp.maximum(acc1 + b1_ref[...], 0.0).astype(jnp.bfloat16)

    # conv2 straight from the VMEM-resident intermediate (no im2col, no HBM trip).
    acc2 = conv3x3(w2_ref, lambda off, n: h1_ref[:, pl.ds(off, n)], L2)
    o_ref[0] = (acc2 + b2_ref[...]).astype(o_ref.dtype)


def _round_up(x, m):
    return (x + m - 1) // m * m


def block_forward(x_nchw, w1_hwio, b1, w2_hwio, b2):
    """Block.forward: conv2(relu(conv1(x))).  (N,Cin,H,W) -> (N,Cout,H-4,W-4)."""
    N, Cin, H, W = x_nchw.shape
    Cout1 = w1_hwio.shape[-1]
    Cout2 = w2_hwio.shape[-1]
    Ho2, Wo2 = H - 4, W - 4

    # Channel padding: 16 = bf16 sublane packing for MXU operands; 8 is enough
    # for the f32 output rows.
    Cin_p = _round_up(Cin, 16)
    Cout1_p = _round_up(Cout1, 16)
    Cout2_p = _round_up(Cout2, 8)

    # Lane padding so every store / matmul N-tile is a 128-lane multiple.
    # A (kh, kw) tap is a lane offset of kh*W + kw (max 2*W + 2).
    tap = 2 * W + 2
    L2 = Ho2 * W
    L2_p = _round_up(L2, 128)
    L1_p = _round_up(L2_p + tap, 128)   # >= (H-2)*W + 2 automatically
    Lx_p = _round_up(L1_p + tap, 128)   # >= H*W automatically

    # Layout-only glue (cheap): flatten spatial, zero-pad channels/lanes,
    # weights as (tap, Cout, Cin), everything feeding the MXU cast to bf16.
    x_flat = x_nchw.reshape(N, Cin, H * W)
    x_flat = jnp.pad(x_flat, ((0, 0), (0, Cin_p - Cin), (0, Lx_p - H * W)))
    x_flat = x_flat.astype(jnp.bfloat16)

    def prep_w(w_hwio, cout_p, cin_p):
        cin, cout = w_hwio.shape[2], w_hwio.shape[3]
        w = jnp.transpose(w_hwio, (0, 1, 3, 2)).reshape(9, cout, cin)
        w = jnp.pad(w, ((0, 0), (0, cout_p - cout), (0, cin_p - cin)))
        return w.astype(jnp.bfloat16)

    w1_t = prep_w(w1_hwio, Cout1_p, Cin_p)
    w2_t = prep_w(w2_hwio, Cout2_p, Cout1_p)
    b1_col = jnp.pad(b1, (0, Cout1_p - Cout1)).reshape(Cout1_p, 1).astype(jnp.float32)
    b2_col = jnp.pad(b2, (0, Cout2_p - Cout2)).reshape(Cout2_p, 1).astype(jnp.float32)

    out_flat = pl.pallas_call(
        functools.partial(_block_kernel, W=W),
        out_shape=jax.ShapeDtypeStruct((N, Cout2_p, L2_p), x_nchw.dtype),
        grid_spec=pltpu.PrefetchScalarGridSpec(
            num_scalar_prefetch=0,
            grid=(N,),
            in_specs=[
                pl.BlockSpec((1, Cin_p, Lx_p), lambda n: (n, 0, 0)),
                pl.BlockSpec((9, Cout1_p, Cin_p), lambda n: (0, 0, 0)),
                pl.BlockSpec((Cout1_p, 1), lambda n: (0, 0)),
                pl.BlockSpec((9, Cout2_p, Cout1_p), lambda n: (0, 0, 0)),
                pl.BlockSpec((Cout2_p, 1), lambda n: (0, 0)),
            ],
            out_specs=pl.BlockSpec((1, Cout2_p, L2_p), lambda n: (n, 0, 0)),
            scratch_shapes=[
                pltpu.VMEM((Cout1_p, L1_p), jnp.bfloat16),  # relu(conv1) stays in VMEM
            ],
        ),
        compiler_params=pltpu.CompilerParams(
            dimension_semantics=("parallel",)),  # v7x: split batch over 2 TCs
    )(x_flat, w1_t, b1_col, w2_t, b2_col)

    # Drop pad channels / junk lanes and unflatten.  In production, return the
    # flat layout and fuse this slice into the consumer instead of paying a
    # second HBM copy here.
    out = out_flat[:, :Cout2, :L2].reshape(N, Cout2, Ho2, W)
    return out[..., :Wo2]


def _reference(x_nchw, w1_hwio, b1, w2_hwio, b2):
    """Pure-JAX f32 reference using lax.conv (correctness check only)."""
    x = jnp.transpose(x_nchw, (0, 2, 3, 1))
    dn = ("NHWC", "HWIO", "NHWC")
    h1 = lax.conv_general_dilated(x, w1_hwio, (1, 1), "VALID",
                                  dimension_numbers=dn) + b1
    h1 = jnp.maximum(h1, 0.0)
    y = lax.conv_general_dilated(h1, w2_hwio, (1, 1), "VALID",
                                 dimension_numbers=dn) + b2
    return jnp.transpose(y, (0, 3, 1, 2))


if __name__ == "__main__":
    in_ch, out_ch = 4, 8
    N, H, W = 2, 16, 16

    key = jax.random.PRNGKey(0)
    kx, kw1, kb1, kw2, kb2 = jax.random.split(key, 5)

    x = jax.random.normal(kx, (N, in_ch, H, W), dtype=jnp.float32)
    # Deterministic synthetic parameters (shapes match nn.Conv2d(in_ch, out_ch, 3)).
    w1 = jax.random.normal(kw1, (3, 3, in_ch, out_ch), dtype=jnp.float32) * 0.1
    b1 = jax.random.normal(kb1, (out_ch,), dtype=jnp.float32) * 0.1
    w2 = jax.random.normal(kw2, (3, 3, out_ch, out_ch), dtype=jnp.float32) * 0.1
    b2 = jax.random.normal(kb2, (out_ch,), dtype=jnp.float32) * 0.1

    y = jax.block_until_ready(block_forward(x, w1, b1, w2, b2))
    y_ref = jax.block_until_ready(_reference(x, w1, b1, w2, b2))

    assert y.shape == (N, out_ch, H - 4, W - 4), y.shape
    # Tolerance loosened vs the f32 reference because the MXU operands are bf16
    # (expected precision loss per the perf review, not a kernel bug).
    assert jnp.allclose(y, y_ref, atol=5e-2, rtol=5e-2), "mismatch vs reference"

    print("KERNEL_OK")
</pallas_src>

<mosaic_0001>
module attributes {stable_mosaic.version = 11 : i64} {
  func.func @_block_kernel(%arg0: i32, %arg1: memref<1x16x512xbf16, #tpu.memory_space<vmem>>, %arg2: memref<9x16x16xbf16, #tpu.memory_space<vmem>>, %arg3: memref<16x1xf32, #tpu.memory_space<vmem>>, %arg4: memref<9x8x16xbf16, #tpu.memory_space<vmem>>, %arg5: memref<8x1xf32, #tpu.memory_space<vmem>>, %arg6: memref<1x8x256xf32, #tpu.memory_space<vmem>>, %arg7: memref<16x384xbf16, #tpu.memory_space<vmem>>) attributes {dimension_semantics = [#tpu.dimension_semantics<parallel>], iteration_bounds = array<i64: 2>, scalar_prefetch = 0 : i64, scratch_operands = 1 : i64, tpu.core_type = #tpu.core_type<tc>, window_params = [{transform_indices = @transform_0, window_bounds = array<i64: 1, 16, 512>}, {pipeline_mode = #tpu.pipeline_mode<synchronous>, transform_indices = @transform_1, window_bounds = array<i64: 9, 16, 16>}, {pipeline_mode = #tpu.pipeline_mode<synchronous>, transform_indices = @transform_2, window_bounds = array<i64: 16, 1>}, {pipeline_mode = #tpu.pipeline_mode<synchronous>, transform_indices = @transform_3, window_bounds = array<i64: 9, 8, 16>}, {pipeline_mode = #tpu.pipeline_mode<synchronous>, transform_indices = @transform_4, window_bounds = array<i64: 8, 1>}, {transform_indices = @transform_5, window_bounds = array<i64: 1, 8, 256>}]} {
    %c0 = arith.constant 0 : index
    %c0_0 = arith.constant 0 : index
    %c0_1 = arith.constant 0 : index
    %0 = vector.load %arg2[%c0, %c0_0, %c0_1] : memref<9x16x16xbf16, #tpu.memory_space<vmem>>, vector<1x16x16xbf16>
    %1 = vector.shape_cast %0 : vector<1x16x16xbf16> to vector<16x16xbf16>
    %c0_2 = arith.constant 0 : index
    %c0_3 = arith.constant 0 : index
    %c0_4 = arith.constant 0 : index
    %2 = vector.load %arg1[%c0_2, %c0_3, %c0_4] : memref<1x16x512xbf16, #tpu.memory_space<vmem>>, vector<1x16x384xbf16>
    %3 = vector.shape_cast %2 : vector<1x16x384xbf16> to vector<16x384xbf16>
    %cst = arith.constant dense<0.000000e+00> : vector<16x384xf32>
    %4 = tpu.matmul %1, %3, %cst {dimension_numbers = #tpu.dot_dimension_numbers<[1], [0], [0], [1], [0, 0, 1, 1], [], []>} : vector<16x16xbf16>, vector<16x384xbf16>, vector<16x384xf32> -> vector<16x384xf32>
    %c1 = arith.constant 1 : index
    %c0_5 = arith.constant 0 : index
    %c0_6 = arith.constant 0 : index
    %5 = vector.load %arg2[%c1, %c0_5, %c0_6] : memref<9x16x16xbf16, #tpu.memory_space<vmem>>, vector<1x16x16xbf16>
    %6 = vector.shape_cast %5 : vector<1x16x16xbf16> to vector<16x16xbf16>
    %c0_7 = arith.constant 0 : index
    %c0_8 = arith.constant 0 : index
    %c1_9 = arith.constant 1 : index
    %7 = vector.load %arg1[%c0_7, %c0_8, %c1_9] : memref<1x16x512xbf16, #tpu.memory_space<vmem>>, vector<1x16x384xbf16>
    %8 = vector.shape_cast %7 : vector<1x16x384xbf16> to vector<16x384xbf16>
    %cst_10 = arith.constant dense<0.000000e+00> : vector<16x384xf32>
    %9 = tpu.matmul %6, %8, %cst_10 {dimension_numbers = #tpu.dot_dimension_numbers<[1], [0], [0], [1], [0, 0, 1, 1], [], []>} : vector<16x16xbf16>, vector<16x384xbf16>, vector<16x384xf32> -> vector<16x384xf32>
    %10 = arith.addf %4, %9 : vector<16x384xf32>
    %c2 = arith.constant 2 : index
    %c0_11 = arith.constant 0 : index
    %c0_12 = arith.constant 0 : index
    %11 = vector.load %arg2[%c2, %c0_11, %c0_12] : memref<9x16x16xbf16, #tpu.memory_space<vmem>>, vector<1x16x16xbf16>
    %12 = vector.shape_cast %11 : vector<1x16x16xbf16> to vector<16x16xbf16>
    %c0_13 = arith.constant 0 : index
    %c0_14 = arith.constant 0 : index
    %c2_15 = arith.constant 2 : index
    %13 = vector.load %arg1[%c0_13, %c0_14, %c2_15] : memref<1x16x512xbf16, #tpu.memory_space<vmem>>, vector<1x16x384xbf16>
    %14 = vector.shape_cast %13 : vector<1x16x384xbf16> to vector<16x384xbf16>
    %cst_16 = arith.constant dense<0.000000e+00> : vector<16x384xf32>
    %15 = tpu.matmul %12, %14, %cst_16 {dimension_numbers = #tpu.dot_dimension_numbers<[1], [0], [0], [1], [0, 0, 1, 1], [], []>} : vector<16x16xbf16>, vector<16x384xbf16>, vector<16x384xf32> -> vector<16x384xf32>
    %16 = arith.addf %10, %15 : vector<16x384xf32>
    %c3 = arith.constant 3 : index
    %c0_17 = arith.constant 0 : index
    %c0_18 = arith.constant 0 : index
    %17 = vector.load %arg2[%c3, %c0_17, %c0_18] : memref<9x16x16xbf16, #tpu.memory_space<vmem>>, vector<1x16x16xbf16>
    %18 = vector.shape_cast %17 : vector<1x16x16xbf16> to vector<16x16xbf16>
    %c0_19 = arith.constant 0 : index
    %c0_20 = arith.constant 0 : index
    %c16 = arith.constant 16 : index
    %19 = vector.load %arg1[%c0_19, %c0_20, %c16] : memref<1x16x512xbf16, #tpu.memory_space<vmem>>, vector<1x16x384xbf16>
    %20 = vector.shape_cast %19 : vector<1x16x384xbf16> to vector<16x384xbf16>
    %cst_21 = arith.constant dense<0.000000e+00> : vector<16x384xf32>
    %21 = tpu.matmul %18, %20, %cst_21 {dimension_numbers = #tpu.dot_dimension_numbers<[1], [0], [0], [1], [0, 0, 1, 1], [], []>} : vector<16x16xbf16>, vector<16x384xbf16>, vector<16x384xf32> -> vector<16x384xf32>
    %22 = arith.addf %16, %21 : vector<16x384xf32>
    %c4 = arith.constant 4 : index
    %c0_22 = arith.constant 0 : index
    %c0_23 = arith.constant 0 : index
    %23 = vector.load %arg2[%c4, %c0_22, %c0_23] : memref<9x16x16xbf16, #tpu.memory_space<vmem>>, vector<1x16x16xbf16>
    %24 = vector.shape_cast %23 : vector<1x16x16xbf16> to vector<16x16xbf16>
    %c0_24 = arith.constant 0 : index
    %c0_25 = arith.constant 0 : index
    %c17 = arith.constant 17 : index
    %25 = vector.load %arg1[%c0_24, %c0_25, %c17] : memref<1x16x512xbf16, #tpu.memory_space<vmem>>, vector<1x16x384xbf16>
    %26 = vector.shape_cast %25 : vector<1x16x384xbf16> to vector<16x384xbf16>
    %cst_26 = arith.constant dense<0.000000e+00> : vector<16x384xf32>
    %27 = tpu.matmul %24, %26, %cst_26 {dimension_numbers = #tpu.dot_dimension_numbers<[1], [0], [0], [1], [0, 0, 1, 1], [], []>} : vector<16x16xbf16>, vector<16x384xbf16>, vector<16x384xf32> -> vector<16x384xf32>
    %28 = arith.addf %22, %27 : vector<16x384xf32>
    %c5 = arith.constant 5 : index
    %c0_27 = arith.constant 0 : index
    %c0_28 = arith.constant 0 : index
    %29 = vector.load %arg2[%c5, %c0_27, %c0_28] : memref<9x16x16xbf16, #tpu.memory_space<vmem>>, vector<1x16x16xbf16>
    %30 = vector.shape_cast %29 : vector<1x16x16xbf16> to vector<16x16xbf16>
    %c0_29 = arith.constant 0 : index
    %c0_30 = arith.constant 0 : index
    %c18 = arith.constant 18 : index
    %31 = vector.load %arg1[%c0_29, %c0_30, %c18] : memref<1x16x512xbf16, #tpu.memory_space<vmem>>, vector<1x16x384xbf16>
    %32 = vector.shape_cast %31 : vector<1x16x384xbf16> to vector<16x384xbf16>
    %cst_31 = arith.constant dense<0.000000e+00> : vector<16x384xf32>
    %33 = tpu.matmul %30, %32, %cst_31 {dimension_numbers = #tpu.dot_dimension_numbers<[1], [0], [0], [1], [0, 0, 1, 1], [], []>} : vector<16x16xbf16>, vector<16x384xbf16>, vector<16x384xf32> -> vector<16x384xf32>
    %34 = arith.addf %28, %33 : vector<16x384xf32>
    %c6 = arith.constant 6 : index
    %c0_32 = arith.constant 0 : index
    %c0_33 = arith.constant 0 : index
    %35 = vector.load %arg2[%c6, %c0_32, %c0_33] : memref<9x16x16xbf16, #tpu.memory_space<vmem>>, vector<1x16x16xbf16>
    %36 = vector.shape_cast %35 : vector<1x16x16xbf16> to vector<16x16xbf16>
    %c0_34 = arith.constant 0 : index
    %c0_35 = arith.constant 0 : index
    %c32 = arith.constant 32 : index
    %37 = vector.load %arg1[%c0_34, %c0_35, %c32] : memref<1x16x512xbf16, #tpu.memory_space<vmem>>, vector<1x16x384xbf16>
    %38 = vector.shape_cast %37 : vector<1x16x384xbf16> to vector<16x384xbf16>
    %cst_36 = arith.constant dense<0.000000e+00> : vector<16x384xf32>
    %39 = tpu.matmul %36, %38, %cst_36 {dimension_numbers = #tpu.dot_dimension_numbers<[1], [0], [0], [1], [0, 0, 1, 1], [], []>} : vector<16x16xbf16>, vector<16x384xbf16>, vector<16x384xf32> -> vector<16x384xf32>
    %40 = arith.addf %34, %39 : vector<16x384xf32>
    %c7 = arith.constant 7 : index
    %c0_37 = arith.constant 0 : index
    %c0_38 = arith.constant 0 : index
    %41 = vector.load %arg2[%c7, %c0_37, %c0_38] : memref<9x16x16xbf16, #tpu.memory_space<vmem>>, vector<1x16x16xbf16>
    %42 = vector.shape_cast %41 : vector<1x16x16xbf16> to vector<16x16xbf16>
    %c0_39 = arith.constant 0 : index
    %c0_40 = arith.constant 0 : index
    %c33 = arith.constant 33 : index
    %43 = vector.load %arg1[%c0_39, %c0_40, %c33] : memref<1x16x512xbf16, #tpu.memory_space<vmem>>, vector<1x16x384xbf16>
    %44 = vector.shape_cast %43 : vector<1x16x384xbf16> to vector<16x384xbf16>
    %cst_41 = arith.constant dense<0.000000e+00> : vector<16x384xf32>
    %45 = tpu.matmul %42, %44, %cst_41 {dimension_numbers = #tpu.dot_dimension_numbers<[1], [0], [0], [1], [0, 0, 1, 1], [], []>} : vector<16x16xbf16>, vector<16x384xbf16>, vector<16x384xf32> -> vector<16x384xf32>
    %46 = arith.addf %40, %45 : vector<16x384xf32>
    %c8 = arith.constant 8 : index
    %c0_42 = arith.constant 0 : index
    %c0_43 = arith.constant 0 : index
    %47 = vector.load %arg2[%c8, %c0_42, %c0_43] : memref<9x16x16xbf16, #tpu.memory_space<vmem>>, vector<1x16x16xbf16>
    %48 = vector.shape_cast %47 : vector<1x16x16xbf16> to vector<16x16xbf16>
    %c0_44 = arith.constant 0 : index
    %c0_45 = arith.constant 0 : index
    %c34 = arith.constant 34 : index
    %49 = vector.load %arg1[%c0_44, %c0_45, %c34] : memref<1x16x512xbf16, #tpu.memory_space<vmem>>, vector<1x16x384xbf16>
    %50 = vector.shape_cast %49 : vector<1x16x384xbf16> to vector<16x384xbf16>
    %cst_46 = arith.constant dense<0.000000e+00> : vector<16x384xf32>
    %51 = tpu.matmul %48, %50, %cst_46 {dimension_numbers = #tpu.dot_dimension_numbers<[1], [0], [0], [1], [0, 0, 1, 1], [], []>} : vector<16x16xbf16>, vector<16x384xbf16>, vector<16x384xf32> -> vector<16x384xf32>
    %52 = arith.addf %46, %51 : vector<16x384xf32>
    %c0_47 = arith.constant 0 : index
    %c0_48 = arith.constant 0 : index
    %53 = vector.load %arg3[%c0_47, %c0_48] : memref<16x1xf32, #tpu.memory_space<vmem>>, vector<16x1xf32>
    %54 = vector.broadcast %53 : vector<16x1xf32> to vector<16x384xf32>
    %55 = arith.addf %52, %54 : vector<16x384xf32>
    %cst_49 = arith.constant 0.000000e+00 : f32
    %56 = vector.broadcast %cst_49 : f32 to vector<16x384xf32>
    %57 = arith.maximumf %55, %56 : vector<16x384xf32>
    %58 = arith.truncf %57 : vector<16x384xf32> to vector<16x384xbf16>
    %c0_50 = arith.constant 0 : index
    %c0_51 = arith.constant 0 : index
    %59 = vector.load %arg7[%c0_50, %c0_51] : memref<16x384xbf16, #tpu.memory_space<vmem>>, vector<16x384xbf16>
    tpu.vector_store %arg7[%c0_50, %c0_51], %58 {strides = array<i32>} : memref<16x384xbf16, #tpu.memory_space<vmem>>, vector<16x384xbf16>,
    %c0_52 = arith.constant 0 : index
    %c0_53 = arith.constant 0 : index
    %c0_54 = arith.constant 0 : index
    %60 = vector.load %arg4[%c0_52, %c0_53, %c0_54] : memref<9x8x16xbf16, #tpu.memory_space<vmem>>, vector<1x8x16xbf16>
    %61 = vector.shape_cast %60 : vector<1x8x16xbf16> to vector<8x16xbf16>
    %c0_55 = arith.constant 0 : index
    %c0_56 = arith.constant 0 : index
    %62 = vector.load %arg7[%c0_55, %c0_56] : memref<16x384xbf16, #tpu.memory_space<vmem>>, vector<16x256xbf16>
    %cst_57 = arith.constant dense<0.000000e+00> : vector<8x256xf32>
    %63 = tpu.matmul %61, %62, %cst_57 {dimension_numbers = #tpu.dot_dimension_numbers<[1], [0], [0], [1], [0, 0, 1, 1], [], []>} : vector<8x16xbf16>, vector<16x256xbf16>, vector<8x256xf32> -> vector<8x256xf32>
    %c1_58 = arith.constant 1 : index
    %c0_59 = arith.constant 0 : index
    %c0_60 = arith.constant 0 : index
    %64 = vector.load %arg4[%c1_58, %c0_59, %c0_60] : memref<9x8x16xbf16, #tpu.memory_space<vmem>>, vector<1x8x16xbf16>
    %65 = vector.shape_cast %64 : vector<1x8x16xbf16> to vector<8x16xbf16>
    %c0_61 = arith.constant 0 : index
    %c1_62 = arith.constant 1 : index
    %66 = vector.load %arg7[%c0_61, %c1_62] : memref<16x384xbf16, #tpu.memory_space<vmem>>, vector<16x256xbf16>
    %cst_63 = arith.constant dense<0.000000e+00> : vector<8x256xf32>
    %67 = tpu.matmul %65, %66, %cst_63 {dimension_numbers = #tpu.dot_dimension_numbers<[1], [0], [0], [1], [0, 0, 1, 1], [], []>} : vector<8x16xbf16>, vector<16x256xbf16>, vector<8x256xf32> -> vector<8x256xf32>
    %68 = arith.addf %63, %67 : vector<8x256xf32>
    %c2_64 = arith.constant 2 : index
    %c0_65 = arith.constant 0 : index
    %c0_66 = arith.constant 0 : index
    %69 = vector.load %arg4[%c2_64, %c0_65, %c0_66] : memref<9x8x16xbf16, #tpu.memory_space<vmem>>, vector<1x8x16xbf16>
    %70 = vector.shape_cast %69 : vector<1x8x16xbf16> to vector<8x16xbf16>
    %c0_67 = arith.constant 0 : index
    %c2_68 = arith.constant 2 : index
    %71 = vector.load %arg7[%c0_67, %c2_68] : memref<16x384xbf16, #tpu.memory_space<vmem>>, vector<16x256xbf16>
    %cst_69 = arith.constant dense<0.000000e+00> : vector<8x256xf32>
    %72 = tpu.matmul %70, %71, %cst_69 {dimension_numbers = #tpu.dot_dimension_numbers<[1], [0], [0], [1], [0, 0, 1, 1], [], []>} : vector<8x16xbf16>, vector<16x256xbf16>, vector<8x256xf32> -> vector<8x256xf32>
    %73 = arith.addf %68, %72 : vector<8x256xf32>
    %c3_70 = arith.constant 3 : index
    %c0_71 = arith.constant 0 : index
    %c0_72 = arith.constant 0 : index
    %74 = vector.load %arg4[%c3_70, %c0_71, %c0_72] : memref<9x8x16xbf16, #tpu.memory_space<vmem>>, vector<1x8x16xbf16>
    %75 = vector.shape_cast %74 : vector<1x8x16xbf16> to vector<8x16xbf16>
    %c0_73 = arith.constant 0 : index
    %c16_74 = arith.constant 16 : index
    %76 = vector.load %arg7[%c0_73, %c16_74] : memref<16x384xbf16, #tpu.memory_space<vmem>>, vector<16x256xbf16>
    %cst_75 = arith.constant dense<0.000000e+00> : vector<8x256xf32>
    %77 = tpu.matmul %75, %76, %cst_75 {dimension_numbers = #tpu.dot_dimension_numbers<[1], [0], [0], [1], [0, 0, 1, 1], [], []>} : vector<8x16xbf16>, vector<16x256xbf16>, vector<8x256xf32> -> vector<8x256xf32>
    %78 = arith.addf %73, %77 : vector<8x256xf32>
    %c4_76 = arith.constant 4 : index
    %c0_77 = arith.constant 0 : index
    %c0_78 = arith.constant 0 : index
    %79 = vector.load %arg4[%c4_76, %c0_77, %c0_78] : memref<9x8x16xbf16, #tpu.memory_space<vmem>>, vector<1x8x16xbf16>
    %80 = vector.shape_cast %79 : vector<1x8x16xbf16> to vector<8x16xbf16>
    %c0_79 = arith.constant 0 : index
    %c17_80 = arith.constant 17 : index
    %81 = vector.load %arg7[%c0_79, %c17_80] : memref<16x384xbf16, #tpu.memory_space<vmem>>, vector<16x256xbf16>
    %cst_81 = arith.constant dense<0.000000e+00> : vector<8x256xf32>
    %82 = tpu.matmul %80, %81, %cst_81 {dimension_numbers = #tpu.dot_dimension_numbers<[1], [0], [0], [1], [0, 0, 1, 1], [], []>} : vector<8x16xbf16>, vector<16x256xbf16>, vector<8x256xf32> -> vector<8x256xf32>
    %83 = arith.addf %78, %82 : vector<8x256xf32>
    %c5_82 = arith.constant 5 : index
    %c0_83 = arith.constant 0 : index
    %c0_84 = arith.constant 0 : index
    %84 = vector.load %arg4[%c5_82, %c0_83, %c0_84] : memref<9x8x16xbf16, #tpu.memory_space<vmem>>, vector<1x8x16xbf16>
    %85 = vector.shape_cast %84 : vector<1x8x16xbf16> to vector<8x16xbf16>
    %c0_85 = arith.constant 0 : index
    %c18_86 = arith.constant 18 : index
    %86 = vector.load %arg7[%c0_85, %c18_86] : memref<16x384xbf16, #tpu.memory_space<vmem>>, vector<16x256xbf16>
    %cst_87 = arith.constant dense<0.000000e+00> : vector<8x256xf32>
    %87 = tpu.matmul %85, %86, %cst_87 {dimension_numbers = #tpu.dot_dimension_numbers<[1], [0], [0], [1], [0, 0, 1, 1], [], []>} : vector<8x16xbf16>, vector<16x256xbf16>, vector<8x256xf32> -> vector<8x256xf32>
    %88 = arith.addf %83, %87 : vector<8x256xf32>
    %c6_88 = arith.constant 6 : index
    %c0_89 = arith.constant 0 : index
    %c0_90 = arith.constant 0 : index
    %89 = vector.load %arg4[%c6_88, %c0_89, %c0_90] : memref<9x8x16xbf16, #tpu.memory_space<vmem>>, vector<1x8x16xbf16>
    %90 = vector.shape_cast %89 : vector<1x8x16xbf16> to vector<8x16xbf16>
    %c0_91 = arith.constant 0 : index
    %c32_92 = arith.constant 32 : index
    %91 = vector.load %arg7[%c0_91, %c32_92] : memref<16x384xbf16, #tpu.memory_space<vmem>>, vector<16x256xbf16>
    %cst_93 = arith.constant dense<0.000000e+00> : vector<8x256xf32>
    %92 = tpu.matmul %90, %91, %cst_93 {dimension_numbers = #tpu.dot_dimension_numbers<[1], [0], [0], [1], [0, 0, 1, 1], [], []>} : vector<8x16xbf16>, vector<16x256xbf16>, vector<8x256xf32> -> vector<8x256xf32>
    %93 = arith.addf %88, %92 : vector<8x256xf32>
    %c7_94 = arith.constant 7 : index
    %c0_95 = arith.constant 0 : index
    %c0_96 = arith.constant 0 : index
    %94 = vector.load %arg4[%c7_94, %c0_95, %c0_96] : memref<9x8x16xbf16, #tpu.memory_space<vmem>>, vector<1x8x16xbf16>
    %95 = vector.shape_cast %94 : vector<1x8x16xbf16> to vector<8x16xbf16>
    %c0_97 = arith.constant 0 : index
    %c33_98 = arith.constant 33 : index
    %96 = vector.load %arg7[%c0_97, %c33_98] : memref<16x384xbf16, #tpu.memory_space<vmem>>, vector<16x256xbf16>
    %cst_99 = arith.constant dense<0.000000e+00> : vector<8x256xf32>
    %97 = tpu.matmul %95, %96, %cst_99 {dimension_numbers = #tpu.dot_dimension_numbers<[1], [0], [0], [1], [0, 0, 1, 1], [], []>} : vector<8x16xbf16>, vector<16x256xbf16>, vector<8x256xf32> -> vector<8x256xf32>
    %98 = arith.addf %93, %97 : vector<8x256xf32>
    %c8_100 = arith.constant 8 : index
    %c0_101 = arith.constant 0 : index
    %c0_102 = arith.constant 0 : index
    %99 = vector.load %arg4[%c8_100, %c0_101, %c0_102] : memref<9x8x16xbf16, #tpu.memory_space<vmem>>, vector<1x8x16xbf16>
    %100 = vector.shape_cast %99 : vector<1x8x16xbf16> to vector<8x16xbf16>
    %c0_103 = arith.constant 0 : index
    %c34_104 = arith.constant 34 : index
    %101 = vector.load %arg7[%c0_103, %c34_104] : memref<16x384xbf16, #tpu.memory_space<vmem>>, vector<16x256xbf16>
    %cst_105 = arith.constant dense<0.000000e+00> : vector<8x256xf32>
    %102 = tpu.matmul %100, %101, %cst_105 {dimension_numbers = #tpu.dot_dimension_numbers<[1], [0], [0], [1], [0, 0, 1, 1], [], []>} : vector<8x16xbf16>, vector<16x256xbf16>, vector<8x256xf32> -> vector<8x256xf32>
    %103 = arith.addf %98, %102 : vector<8x256xf32>
    %c0_106 = arith.constant 0 : index
    %c0_107 = arith.constant 0 : index
    %104 = vector.load %arg5[%c0_106, %c0_107] : memref<8x1xf32, #tpu.memory_space<vmem>>, vector<8x1xf32>
    %105 = vector.broadcast %104 : vector<8x1xf32> to vector<8x256xf32>
    %106 = arith.addf %103, %105 : vector<8x256xf32>
    %c0_108 = arith.constant 0 : index
    %c0_109 = arith.constant 0 : index
    %c0_110 = arith.constant 0 : index
    %107 = vector.load %arg6[%c0_108, %c0_109, %c0_110] : memref<1x8x256xf32, #tpu.memory_space<vmem>>, vector<1x8x256xf32>
    %108 = vector.shape_cast %107 : vector<1x8x256xf32> to vector<8x256xf32>
    %109 = vector.shape_cast %106 : vector<8x256xf32> to vector<1x8x256xf32>
    tpu.vector_store %arg6[%c0_108, %c0_109, %c0_110], %109 {strides = array<i32>} : memref<1x8x256xf32, #tpu.memory_space<vmem>>, vector<1x8x256xf32>,
    return
  }
  func.func @transform_0(%arg0: i32) -> (i32, i32, i32) {
    %c0_i32 = arith.constant 0 : i32
    %c0_i32_0 = arith.constant 0 : i32
    %c0_i32_1 = arith.constant 0 : i32
    return %arg0, %c0_i32, %c0_i32_0 : i32, i32, i32
  }
  func.func @transform_1(%arg0: i32) -> (i32, i32, i32) {
    %c0_i32 = arith.constant 0 : i32
    %c0_i32_0 = arith.constant 0 : i32
    %c0_i32_1 = arith.constant 0 : i32
    %c0_i32_2 = arith.constant 0 : i32
    return %c0_i32, %c0_i32_0, %c0_i32_1 : i32, i32, i32
  }
  func.func @transform_2(%arg0: i32) -> (i32, i32) {
    %c0_i32 = arith.constant 0 : i32
    %c0_i32_0 = arith.constant 0 : i32
    %c0_i32_1 = arith.constant 0 : i32
    return %c0_i32, %c0_i32_0 : i32, i32
  }
  func.func @transform_3(%arg0: i32) -> (i32, i32, i32) {
    %c0_i32 = arith.constant 0 : i32
    %c0_i32_0 = arith.constant 0 : i32
    %c0_i32_1 = arith.constant 0 : i32
    %c0_i32_2 = arith.constant 0 : i32
    return %c0_i32, %c0_i32_0, %c0_i32_1 : i32, i32, i32
  }
  func.func @transform_4(%arg0: i32) -> (i32, i32) {
    %c0_i32 = arith.constant 0 : i32
    %c0_i32_0 = arith.constant 0 : i32
    %c0_i32_1 = arith.constant 0 : i32
    return %c0_i32, %c0_i32_0 : i32, i32
  }
  func.func @transform_5(%arg0: i32) -> (i32, i32, i32) {
    %c0_i32 = arith.constant 0 : i32
    %c0_i32_0 = arith.constant 0 : i32
    %c0_i32_1 = arith.constant 0 : i32
    return %arg0, %c0_i32, %c0_i32_0 : i32, i32, i32
  }
}

</mosaic_0001>

<llo_original>
// kernel: tpu_custom_call.1
$region0: #{tpu_custom_call.1}
  #allocation0 [shape = 'u32[]', space=smem, size = 0x4, offset = 0x4, fixed_abs, tag = 'smem constant byte address 0x4 - core index']
  #allocation1 [shape = 'u32[144,128]{1,0:T(1,128)}', space=vmem, size = 0x12000, scoped, tag = 'internal scratch']
  #allocation2 [shape = 'bf16[16,384]{1,0:T(16,128)(2,1)}', space=vmem, size = 0x3000, scoped, tag = 'scratch operand']
  %s0 = inlined_call_operand.hbm [shape: bf16[2,16,512], index: 0, kind: input, shape index: {}]
  %s1 = inlined_call_operand.hbm [shape: bf16[9,16,16], index: 1, kind: input, shape index: {}]
  %s2 = inlined_call_operand.vmem [shape: f32[16,1], index: 2, kind: input, shape index: {}]
  %s3 = inlined_call_operand.vmem [shape: bf16[9,8,16], index: 3, kind: input, shape index: {}]
  %s4 = inlined_call_operand.vmem [shape: f32[8,1], index: 4, kind: input, shape index: {}]
  %s5 = inlined_call_operand.hbm [shape: f32[2,8,256], index: 5, kind: output, shape index: {}]
  %s6 = sld [smem:[#allocation0]]
  $region61: #{tpu_custom_call.1} parent=0
    _
  %s8 = ssub.s32 1, %s6
  %s9 = scalar_select 0, %s8, %s6
  $region1: #{tpu_custom_call.1} parent=0
    #allocation3 [shape = 'u8[32768]{0}', space=vmem, size = 0x8000, scoped, tag = 'input window, operand 0']
    #allocation4 [shape = 's32[2]{0}', space=sflag, size = 0x8, scoped, tag = 'scoped memory for tpu_custom_call.1']
    #allocation5 [shape = 's32[2]{0}', space=sflag, size = 0x8, scoped, tag = 'scoped memory for tpu_custom_call.1']
    #allocation6 [shape = 'u8[36864]{0}', space=vmem, size = 0x9000, scoped, tag = 'input window, operand 1, single buffered']
    #allocation7 [shape = 's32[1]{0}', space=sflag, size = 0x4, scoped, tag = 'scoped memory for tpu_custom_call.1']
    #allocation8 [shape = 'u8[16384]{0}', space=vmem, size = 0x4000, scoped, tag = 'output window, operand 0']
    %10 = vsyncpa [#allocation4], 0
    %s11 = scalar_lea.sflag [#allocation4], 1
    %12 = vsyncpa %s11, 0
    %13 = vsyncpa [#allocation7], 0
    %14 = vsyncpa [#allocation5], 0
    %s15 = scalar_lea.sflag [#allocation5], 1
    %16 = vsyncpa %s15, 0
    loop: start=0, step=1, limit=4
    $region2: #{tpu_custom_call.1} parent=1 // loop_pre_header
      _
    $region3: #{tpu_custom_call.1} parent=1 // loop_header
      %s18 = sphi 0, %s22
      %p19 = scmp.ge.s32.totalorder %s18, 4
      %s28 = sphi 0, %s30
      %s31 = sphi 0, %s28
      %s32 = sphi 0, %s31
      %s48 = sphi 0, %s32
      %s52 = sphi 0, %s52
      %s54 = sphi 0, %s52
      %s55 = sphi 0, %s54
      %s69 = sphi 0, %s55
      %s73 = sphi 0, %s73
      %s75 = sphi 0, %s73
      %s76 = sphi 0, %s75
      %s90 = sphi 0, %s76
      %s94 = sphi 0, %s94
      %s96 = sphi 0, %s94
      %s97 = sphi 0, %s96
      %s111 = sphi 0, %s97
      %s115 = sphi 0, %s115
      %s117 = sphi 0, %s115
      %s118 = sphi 0, %s117
      %s132 = sphi 0, %s118
      %s138 = sphi 0, %s140
      %s141 = sphi 0, %s138
      %s142 = sphi 0, %s141
      %s158 = sphi 0, %s142
    $region4: #{tpu_custom_call.1} parent=1 // loop_header_branch
      %21 = sbr.rel (%p19) target = $region8
    $region5: #{tpu_custom_call.1} parent=1 // loop_body
      %s23 = ssub.s32 %s18, 1
      %s24 = ssub.s32 %s18, 2
      %s25 = sadd.s32 %s18, 1
      %s26 = ssub.s32 %s18, %s25
      %p27 = scmp.eq.s32.totalorder %s26, 0
      %s29 = sadd.s32 %s28, 1
      %s30 = scalar_select %p27, %s28, %s29
      %p33 = pneg %p27
      %p34 = scmp.eq.s32.totalorder %s18, 1
      %p35 = por %p33, %p34
      %p36 = scmp.ne.s32.totalorder %s28, %s31
      %p37 = scmp.eq.s32.totalorder %s18, 0
      %p38 = por %p36, %p37
      %p39 = scmp.ne.s32.totalorder %s28, %s31
      %p40 = scmp.eq.s32.totalorder %s23, 1
      %p41 = por %p39, %p40
      %p42 = scmp.ne.s32.totalorder %s31, %s32
      %p43 = scmp.eq.s32.totalorder %s23, 0
      %p44 = por %p42, %p43
      %p45 = scmp.ne.s32.totalorder %s31, %s32
      %p46 = scmp.eq.s32.totalorder %s24, 1
      %p47 = por %p45, %p46
      %p49 = scmp.ne.s32.totalorder %s32, %s48
      %p50 = scmp.eq.s32.totalorder %s24, 0
      %p51 = por %p49, %p50
      %s53 = sadd.s32 %s52, 1
      %p56 = scmp.eq.s32.totalorder %s18, 1
      %p57 = scmp.ne.s32.totalorder %s52, %s54
      %p58 = scmp.eq.s32.totalorder %s18, 0
      %p59 = por %p57, %p58
      %p60 = scmp.ne.s32.totalorder %s52, %s54
      %p61 = scmp.eq.s32.totalorder %s23, 1
      %p62 = por %p60, %p61
      %p63 = scmp.ne.s32.totalorder %s54, %s55
      %p64 = scmp.eq.s32.totalorder %s23, 0
      %p65 = por %p63, %p64
      %p66 = scmp.ne.s32.totalorder %s54, %s55
      %p67 = scmp.eq.s32.totalorder %s24, 1
      %p68 = por %p66, %p67
      %p70 = scmp.ne.s32.totalorder %s55, %s69
      %p71 = scmp.eq.s32.totalorder %s24, 0
      %p72 = por %p70, %p71
      %s74 = sadd.s32 %s73, 1
      %p77 = scmp.eq.s32.totalorder %s18, 1
      %p78 = scmp.ne.s32.totalorder %s73, %s75
      %p79 = scmp.eq.s32.totalorder %s18, 0
      %p80 = por %p78, %p79
      %p81 = scmp.ne.s32.totalorder %s73, %s75
      %p82 = scmp.eq.s32.totalorder %s23, 1
      %p83 = por %p81, %p82
      %p84 = scmp.ne.s32.totalorder %s75, %s76
      %p85 = scmp.eq.s32.totalorder %s23, 0
      %p86 = por %p84, %p85
      %p87 = scmp.ne.s32.totalorder %s75, %s76
      %p88 = scmp.eq.s32.totalorder %s24, 1
      %p89 = por %p87, %p88
      %p91 = scmp.ne.s32.totalorder %s76, %s90
      %p92 = scmp.eq.s32.totalorder %s24, 0
      %p93 = por %p91, %p92
      %s95 = sadd.s32 %s94, 1
      %p98 = scmp.eq.s32.totalorder %s18, 1
      %p99 = scmp.ne.s32.totalorder %s94, %s96
      %p100 = scmp.eq.s32.totalorder %s18, 0
      %p101 = por %p99, %p100
      %p102 = scmp.ne.s32.totalorder %s94, %s96
      %p103 = scmp.eq.s32.totalorder %s23, 1
      %p104 = por %p102, %p103
      %p105 = scmp.ne.s32.totalorder %s96, %s97
      %p106 = scmp.eq.s32.totalorder %s23, 0
      %p107 = por %p105, %p106
      %p108 = scmp.ne.s32.totalorder %s96, %s97
      %p109 = scmp.eq.s32.totalorder %s24, 1
      %p110 = por %p108, %p109
      %p112 = scmp.ne.s32.totalorder %s97, %s111
      %p113 = scmp.eq.s32.totalorder %s24, 0
      %p114 = por %p112, %p113
      %s116 = sadd.s32 %s115, 1
      %p119 = scmp.eq.s32.totalorder %s18, 1
      %p120 = scmp.ne.s32.totalorder %s115, %s117
      %p121 = scmp.eq.s32.totalorder %s18, 0
      %p122 = por %p120, %p121
      %p123 = scmp.ne.s32.totalorder %s115, %s117
      %p124 = scmp.eq.s32.totalorder %s23, 1
      %p125 = por %p123, %p124
      %p126 = scmp.ne.s32.totalorder %s117, %s118
      %p127 = scmp.eq.s32.totalorder %s23, 0
      %p128 = por %p126, %p127
      %p129 = scmp.ne.s32.totalorder %s117, %s118
      %p130 = scmp.eq.s32.totalorder %s24, 1
      %p131 = por %p129, %p130
      %p133 = scmp.ne.s32.totalorder %s118, %s132
      %p134 = scmp.eq.s32.totalorder %s24, 0
      %p135 = por %p133, %p134
      %s136 = ssub.s32 %s18, %s25
      %p137 = scmp.eq.s32.totalorder %s136, 0
      %s139 = sadd.s32 %s138, 1
      %s140 = scalar_select %p137, %s138, %s139
      %p143 = pneg %p137
      %p144 = scmp.eq.s32.totalorder %s18, 1
      %p145 = por %p143, %p144
      %p146 = scmp.ne.s32.totalorder %s138, %s141
      %p147 = scmp.eq.s32.totalorder %s18, 0
      %p148 = por %p146, %p147
      %p149 = scmp.ne.s32.totalorder %s138, %s141
      %p150 = scmp.eq.s32.totalorder %s23, 1
      %p151 = por %p149, %p150
      %p152 = scmp.ne.s32.totalorder %s141, %s142
      %p153 = scmp.eq.s32.totalorder %s23, 0
      %p154 = por %p152, %p153
      %p155 = scmp.ne.s32.totalorder %s141, %s142
      %p156 = scmp.eq.s32.totalorder %s24, 1
      %p157 = por %p155, %p156
      %p159 = scmp.ne.s32.totalorder %s142, %s158
      %p160 = scmp.eq.s32.totalorder %s24, 0
      %p161 = por %p159, %p160
      %p162 = scmp.le.s32.totalorder 1, %s18
      %p163 = scmp.lt.s32.totalorder %s18, 3
      %p164 = pnand %p162, %p163
      %p165 = pneg %p164
      // Predicated region
      $region9: #{tpu_custom_call.1} parent=5 // pred_check
        _
      $region10: #{tpu_custom_call.1} parent=5 // pred_check_branch
        %167 = sbr.rel (%p164) target = $region12
      $region11: #{tpu_custom_call.1} parent=5 // pred_region
        %s168 = ssub.s32 %s18, 1
        // Predicated region
        $region13: #{tpu_custom_call.1} parent=11 // pred_check
          %p169 = pneg %p65
        $region14: #{tpu_custom_call.1} parent=11 // pred_check_branch
          %171 = sbr.rel (%p169) target = $region16
        $region15: #{tpu_custom_call.1} parent=11 // pred_region
          %s173 = ssub.s32 1152, 1152
          %174 = vsyncadd [#allocation7], %s173
          %s175 = sshll.u32 [#allocation6], 4
          %s176 = int_to_ptr.vmem [resolvable:$true] %s175
          %181 = dma.hbm_to_vmem [thread:$0]  %s1, 1152, %s176, [#allocation7], 64, 64, 4
        $region16: #{tpu_custom_call.1} parent=11 // pred_fallthru
          _
        // Predicated region
        $region17: #{tpu_custom_call.1} parent=11 // pred_check
          %p182 = pneg %p86
        $region18: #{tpu_custom_call.1} parent=11 // pred_check_branch
          %184 = sbr.rel (%p182) target = $region20
        $region19: #{tpu_custom_call.1} parent=11 // pred_region
          _
        $region20: #{tpu_custom_call.1} parent=11 // pred_fallthru
          _
        // Predicated region
        $region21: #{tpu_custom_call.1} parent=11 // pred_check
          %p185 = pneg %p107
        $region22: #{tpu_custom_call.1} parent=11 // pred_check_branch
          %187 = sbr.rel (%p185) target = $region24
        $region23: #{tpu_custom_call.1} parent=11 // pred_region
          _
        $region24: #{tpu_custom_call.1} parent=11 // pred_fallthru
          _
        // Predicated region
        $region25: #{tpu_custom_call.1} parent=11 // pred_check
          %p188 = pneg %p128
        $region26: #{tpu_custom_call.1} parent=11 // pred_check_branch
          %190 = sbr.rel (%p188) target = $region28
        $region27: #{tpu_custom_call.1} parent=11 // pred_region
          _
        $region28: #{tpu_custom_call.1} parent=11 // pred_fallthru
          _
      $region12: #{tpu_custom_call.1} parent=5 // pred_fallthru
        _
      %p191 = scmp.lt.s32.totalorder %s18, 2
      // Predicated region
      $region29: #{tpu_custom_call.1} parent=5 // pred_check
        %p192 = pneg %p191
      $region30: #{tpu_custom_call.1} parent=5 // pred_check_branch
        %194 = sbr.rel (%p192) target = $region32
      $region31: #{tpu_custom_call.1} parent=5 // pred_region
        // Predicated region
        $region33: #{tpu_custom_call.1} parent=31 // pred_check
          %p195 = pneg %p38
        $region34: #{tpu_custom_call.1} parent=31 // pred_check_branch
          %197 = sbr.rel (%p195) target = $region36
        $region35: #{tpu_custom_call.1} parent=31 // pred_region
          %s198 = sand.u32 %s28, 1
          %s199 = scalar_lea.sflag [#allocation4], %s198
          %s200 = sand.u32 %s28, 1
          %s201 = smul.addr %s200, 32
          %s202 = scalar_lea.vmem [#allocation3], %s201
          %s204 = ssub.s32 512, 512
          %205 = vsyncadd %s199, %s204
          %s206 = smul.addr %s18, 8
          %s207 = smul.addr %s206, 64
          %s208 = scalar_lea.hbm %s0, %s207
          %s209 = sshll.u32 %s202, 4
          %s210 = int_to_ptr.vmem [resolvable:$true] %s209
          %215 = dma.hbm_to_vmem [thread:$0]  %s208, 512, %s210, %s199, 256, 256, 16
        $region36: #{tpu_custom_call.1} parent=31 // pred_fallthru
          _
      $region32: #{tpu_custom_call.1} parent=5 // pred_fallthru
        _
      %p216 = scmp.le.s32.totalorder 1, %s18
      %p217 = scmp.lt.s32.totalorder %s18, 3
      %p218 = pnand %p216, %p217
      %p219 = pneg %p218
      // Predicated region
      $region37: #{tpu_custom_call.1} parent=5 // pred_check
        _
      $region38: #{tpu_custom_call.1} parent=5 // pred_check_branch
        %221 = sbr.rel (%p218) target = $region40
      $region39: #{tpu_custom_call.1} parent=5 // pred_region
        %s222 = ssub.s32 %s18, 1
        %s223 = sand.u32 %s31, 1
        %s224 = scalar_lea.sflag [#allocation4], %s223
        %s225 = sand.u32 %s31, 1
        %s226 = smul.addr %s225, 32
        %s227 = scalar_lea.vmem [#allocation3], %s226
        // Predicated region
        $region41: #{tpu_custom_call.1} parent=39 // pred_check
          %p228 = pneg %p44
        $region42: #{tpu_custom_call.1} parent=39 // pred_check_branch
          %230 = sbr.rel (%p228) target = $region44
        $region43: #{tpu_custom_call.1} parent=39 // pred_region
          %231 = dma.done %s224, 512
        $region44: #{tpu_custom_call.1} parent=39 // pred_fallthru
          _
        // Predicated region
        $region45: #{tpu_custom_call.1} parent=39 // pred_check
          %p232 = pneg %p65
        $region46: #{tpu_custom_call.1} parent=39 // pred_check_branch
          %234 = sbr.rel (%p232) target = $region48
        $region47: #{tpu_custom_call.1} parent=39 // pred_region
          %235 = dma.done [#allocation7], 1152
        $region48: #{tpu_custom_call.1} parent=39 // pred_fallthru
          _
        %s236 = sand.u32 %s31, 1
        %s237 = scalar_lea.sflag [#allocation4], %s236
        %s238 = sand.u32 %s31, 1
        %s239 = smul.addr %s238, 32
        %s240 = scalar_lea.vmem [#allocation3], %s239
        %p241 = pneg %p44
        %p242 = pneg %p41
        %p243 = pneg %p65
        %p244 = pneg %p62
        %p245 = pneg %p86
        %p246 = pneg %p83
        %p247 = pneg %p107
        %p248 = pneg %p104
        %p249 = pneg %p128
        %p250 = pneg %p125
        %p251 = pneg %p154
        %p252 = pneg %p151
        %s253 = sand.u32 %s141, 1
        %s254 = scalar_lea.sflag [#allocation5], %s253
        %s255 = sand.u32 %s141, 1
        %s256 = smul.addr %s255, 16
        %s257 = scalar_lea.vmem [#allocation8], %s256
        %v259 = vld [vmem:[#allocation6] sm:$0xf]
        %v260 = vld [vmem:[#allocation6 + $0x4] sm:$0xf]
        %v261 = vld [vmem:[%s227] sm:$0xff]
        %v262 = vld [vmem:[%s227 + $0x8] sm:$0xf]
        %v263 = vld [vmem:[%s227 + $0x10] sm:$0xff]
        %v264 = vld [vmem:[%s227 + $0x18] sm:$0xf]
        %s265 = scalar_lea.vmem [#allocation6], 8
        %v266 = vld [vmem:[%s265] sm:$0xf]
        %v267 = vld [vmem:[%s265 + $0x4] sm:$0xf]
        %v268 = vld [vmem:[%s227] sm:$0xff]
        %v269 = vld [vmem:[%s227 + $0x8] sm:$0xff]
        %v270 = vld [vmem:[%s227 + $0x10] sm:$0xff]
        %v271 = vld [vmem:[%s227 + $0x18] sm:$0xff]
        %v274 = vunpack.c.l.b16 %v266
        %v275 = vunpack.c.l.b16 %v267
        %v276 = vpack.c.b16 %v275, %v274
        %v281 = vunpack.c.l.b16 %v268
        %v282 = vunpack.c.h.b16 %v268
        %v283 = vunpack.c.l.b16 %v269
        %v284 = vunpack.c.h.b16 %v269
        %v285 = vunpack.c.l.b16 %v270
        %v286 = vunpack.c.h.b16 %v270
        %v287 = vunpack.c.l.b16 %v271
        %v288 = vunpack.c.h.b16 %v271
        %v289 = vpack.c.b16 %v285, %v281
        %v290 = vpack.c.b16 %v286, %v282
        %v291 = vpack.c.b16 %v287, %v283
        %v292 = vpack.c.b16 %v288, %v284
        %293 = vrot.lane.b32.xlu0 %v289, 127
        %v294 = vpop.permute.xlu0 %293
        %295 = vrot.lane.b32.xlu0 %v290, 127
        %v296 = vpop.permute.xlu0 %295
        %297 = vrot.lane.b32.xlu0 %v291, 127
        %v298 = vpop.permute.xlu0 %297
        %299 = vrot.lane.b32.xlu0 %v292, 127
        %v300 = vpop.permute.xlu0 %299
        %vm301 = vcmask 1039360
        %v302 = vsel %vm301, %v294, %v296
        %v303 = vsel %vm301, %v296, %v298
        %v304 = vsel %vm301, %v298, %v300
        %vm308 = vcmask 130048
        %v310 = vsel %vm308, %v276, 0
        %312 = vmatprep.subr.bf16.mxu0 %v303
        %313 = vmatpush1.bf16.msra.mxu0 %v302
        %314 = vmatprep.subr.bf16.mxu0 0
        %315 = vmatpush1.bf16.msra.mxu0 0
        %316 = vmatprep.subr.bf16.mxu0 0
        %317 = vmatpush1.bf16.msra.mxu0 0
        %318 = vmatprep.subr.bf16.mxu0 0
        %319 = vmatpush1.bf16.msra.mxu0 0
        %320 = vmatprep.subr.bf16.mxu0 0
        %321 = vmatpush1.bf16.msra.mxu0 0
        %322 = vmatprep.subr.bf16.mxu0 0
        %323 = vmatpush1.bf16.msra.mxu0 0
        %324 = vmatprep.subr.bf16.mxu0 0
        %325 = vmatpush1.bf16.msra.mxu0 0
        %326 = vmatprep.subr.bf16.mxu0 0
        %327 = vmatpush1.bf16.msra.mxu0 0
        %328 = vmatprep.subr.bf16.mxu0 0
        %329 = vmatpush1.bf16.msra.mxu0 0
        %330 = vmatprep.subr.bf16.mxu0 0
        %331 = vmatpush1.bf16.msra.mxu0 0
        %332 = vmatprep.subr.bf16.mxu0 0
        %333 = vmatpush1.bf16.msra.mxu0 0
        %334 = vmatprep.subr.bf16.mxu0 0
        %335 = vmatpush1.bf16.msra.mxu0 0
        %336 = vmatprep.subr.bf16.mxu0 0
        %337 = vmatpush1.bf16.msra.mxu0 0
        %338 = vmatprep.subr.bf16.mxu0 0
        %339 = vmatpush1.bf16.msra.mxu0 0
        %340 = vmatprep.subr.bf16.mxu0 0
        %341 = vmatpush1.bf16.msra.mxu0 0
        %342 = vmatprep.subr.bf16.mxu0 0
        %343 = vmatpush1.bf16.msra.mxu0 0
        %344 = vmatprep.mubr.bf16.mxu0 0
        %345 = vmatmul.mubr.bf16.gmra.mrb[0].mxu0 %v310
        %v346 = vpop.f32.mrb[0].mxu0
        %v347 = vadd.f32 0.0, %v346
        %v348 = vpop.f32.mrb[0].mxu0
        %v349 = vadd.f32 0.0, %v348
        %v350 = vpop.f32.mrb[0].mxu0
        %v351 = vadd.f32 0.0, %v350
        %v352 = vpop.f32.mrb[0].mxu0
        %v353 = vadd.f32 0.0, %v352
        %354 = vdwg.mxu0
        %355 = vmatprep.subr.bf16.mxu0 0
        %356 = vmatpush1.bf16.msra.mxu0 %v304
        %357 = vmatprep.subr.bf16.mxu0 0
        %358 = vmatpush1.bf16.msra.mxu0 0
        %359 = vmatprep.subr.bf16.mxu0 0
        %360 = vmatpush1.bf16.msra.mxu0 0
        %361 = vmatprep.subr.bf16.mxu0 0
        %362 = vmatpush1.bf16.msra.mxu0 0
        %363 = vmatprep.subr.bf16.mxu0 0
        %364 = vmatpush1.bf16.msra.mxu0 0
        %365 = vmatprep.subr.bf16.mxu0 0
        %366 = vmatpush1.bf16.msra.mxu0 0
        %367 = vmatprep.subr.bf16.mxu0 0
        %368 = vmatpush1.bf16.msra.mxu0 0
        %369 = vmatprep.subr.bf16.mxu0 0
        %370 = vmatpush1.bf16.msra.mxu0 0
        %371 = vmatprep.subr.bf16.mxu0 0
        %372 = vmatpush1.bf16.msra.mxu0 0
        %373 = vmatprep.subr.bf16.mxu0 0
        %374 = vmatpush1.bf16.msra.mxu0 0
        %375 = vmatprep.subr.bf16.mxu0 0
        %376 = vmatpush1.bf16.msra.mxu0 0
        %377 = vmatprep.subr.bf16.mxu0 0
        %378 = vmatpush1.bf16.msra.mxu0 0
        %379 = vmatprep.subr.bf16.mxu0 0
        %380 = vmatpush1.bf16.msra.mxu0 0
        %381 = vmatprep.subr.bf16.mxu0 0
        %382 = vmatpush1.bf16.msra.mxu0 0
        %383 = vmatprep.subr.bf16.mxu0 0
        %384 = vmatpush1.bf16.msra.mxu0 0
        %385 = vmatprep.subr.bf16.mxu0 0
        %386 = vmatpush1.bf16.msra.mxu0 0
        %387 = vmatprep.mubr.bf16.mxu0 0
        %388 = vmatmul.mubr.bf16.gmra.mrb[0].mxu0 %v310
        %v389 = vpop.f32.mrb[0].mxu0
        %v390 = vadd.f32 0.0, %v389
        %v391 = vpop.f32.mrb[0].mxu0
        %v392 = vpop.f32.mrb[0].mxu0
        %v393 = vadd.f32 0.0, %v392
        %v394 = vpop.f32.mrb[0].mxu0
        %395 = vdwg.mxu0
        %v398 = vunpack.c.l.b16 %v259
        %v399 = vunpack.c.l.b16 %v260
        %v400 = vpack.c.b16 %v399, %v398
        %v405 = vunpack.c.l.b16 %v261
        %v406 = vunpack.c.h.b16 %v261
        %v407 = vunpack.c.l.b16 %v262
        %v408 = vunpack.c.l.b16 %v263
        %v409 = vunpack.c.h.b16 %v263
        %v410 = vunpack.c.l.b16 %v264
        %v411 = vpack.c.b16 %v408, %v405
        %v412 = vpack.c.b16 %v409, %v406
        %v413 = vpack.c.b16 %v410, %v407
        %v418 = vsel %vm308, %v400, 0
        %420 = vmatprep.subr.bf16.mxu0 %v412
        %421 = vmatpush1.bf16.msra.mxu0 %v411
        %422 = vmatprep.subr.bf16.mxu0 0
        %423 = vmatpush1.bf16.msra.mxu0 0
        %424 = vmatprep.subr.bf16.mxu0 0
        %425 = vmatpush1.bf16.msra.mxu0 0
        %426 = vmatprep.subr.bf16.mxu0 0
        %427 = vmatpush1.bf16.msra.mxu0 0
        %428 = vmatprep.subr.bf16.mxu0 0
        %429 = vmatpush1.bf16.msra.mxu0 0
        %430 = vmatprep.subr.bf16.mxu0 0
        %431 = vmatpush1.bf16.msra.mxu0 0
        %432 = vmatprep.subr.bf16.mxu0 0
        %433 = vmatpush1.bf16.msra.mxu0 0
        %434 = vmatprep.subr.bf16.mxu0 0
        %435 = vmatpush1.bf16.msra.mxu0 0
        %436 = vmatprep.subr.bf16.mxu0 0
        %437 = vmatpush1.bf16.msra.mxu0 0
        %438 = vmatprep.subr.bf16.mxu0 0
        %439 = vmatpush1.bf16.msra.mxu0 0
        %440 = vmatprep.subr.bf16.mxu0 0
        %441 = vmatpush1.bf16.msra.mxu0 0
        %442 = vmatprep.subr.bf16.mxu0 0
        %443 = vmatpush1.bf16.msra.mxu0 0
        %444 = vmatprep.subr.bf16.mxu0 0
        %445 = vmatpush1.bf16.msra.mxu0 0
        %446 = vmatprep.subr.bf16.mxu0 0
        %447 = vmatpush1.bf16.msra.mxu0 0
        %448 = vmatprep.subr.bf16.mxu0 0
        %449 = vmatpush1.bf16.msra.mxu0 0
        %450 = vmatprep.subr.bf16.mxu0 0
        %451 = vmatpush1.bf16.msra.mxu0 0
        %452 = vmatprep.mubr.bf16.mxu0 0
        %453 = vmatmul.mubr.bf16.gmra.mrb[0].mxu0 %v418
        %v454 = vpop.f32.mrb[0].mxu0
        %v455 = vadd.f32 %v347, %v454
        %v456 = vpop.f32.mrb[0].mxu0
        %v457 = vadd.f32 %v349, %v456
        %v458 = vpop.f32.mrb[0].mxu0
        %v459 = vadd.f32 %v351, %v458
        %v460 = vpop.f32.mrb[0].mxu0
        %v461 = vadd.f32 %v353, %v460
        %462 = vdwg.mxu0
        %463 = vmatprep.subr.bf16.mxu0 0
        %464 = vmatpush1.bf16.msra.mxu0 %v413
        %465 = vmatprep.subr.bf16.mxu0 0
        %466 = vmatpush1.bf16.msra.mxu0 0
        %467 = vmatprep.subr.bf16.mxu0 0
        %468 = vmatpush1.bf16.msra.mxu0 0
        %469 = vmatprep.subr.bf16.mxu0 0
        %470 = vmatpush1.bf16.msra.mxu0 0
        %471 = vmatprep.subr.bf16.mxu0 0
        %472 = vmatpush1.bf16.msra.mxu0 0
        %473 = vmatprep.subr.bf16.mxu0 0
        %474 = vmatpush1.bf16.msra.mxu0 0
        %475 = vmatprep.subr.bf16.mxu0 0
        %476 = vmatpush1.bf16.msra.mxu0 0
        %477 = vmatprep.subr.bf16.mxu0 0
        %478 = vmatpush1.bf16.msra.mxu0 0
        %479 = vmatprep.subr.bf16.mxu0 0
        %480 = vmatpush1.bf16.msra.mxu0 0
        %481 = vmatprep.subr.bf16.mxu0 0
        %482 = vmatpush1.bf16.msra.mxu0 0
        %483 = vmatprep.subr.bf16.mxu0 0
        %484 = vmatpush1.bf16.msra.mxu0 0
        %485 = vmatprep.subr.bf16.mxu0 0
        %486 = vmatpush1.bf16.msra.mxu0 0
        %487 = vmatprep.subr.bf16.mxu0 0
        %488 = vmatpush1.bf16.msra.mxu0 0
        %489 = vmatprep.subr.bf16.mxu0 0
        %490 = vmatpush1.bf16.msra.mxu0 0
        %491 = vmatprep.subr.bf16.mxu0 0
        %492 = vmatpush1.bf16.msra.mxu0 0
        %493 = vmatprep.subr.bf16.mxu0 0
        %494 = vmatpush1.bf16.msra.mxu0 0
        %495 = vmatprep.mubr.bf16.mxu0 0
        %496 = vmatmul.mubr.bf16.gmra.mrb[0].mxu0 %v418
        %v497 = vpop.f32.mrb[0].mxu0
        %v498 = vadd.f32 %v390, %v497
        %v499 = vpop.f32.mrb[0].mxu0
        %v500 = vpop.f32.mrb[0].mxu0
        %v501 = vadd.f32 %v393, %v500
        %v502 = vpop.f32.mrb[0].mxu0
        %503 = vdwg.mxu0
        %s504 = scalar_lea.vmem [#allocation6], 16
        %v505 = vld [vmem:[%s504] sm:$0xf]
        %v506 = vld [vmem:[%s504 + $0x4] sm:$0xf]
        %v509 = vunpack.c.l.b16 %v505
        %v510 = vunpack.c.l.b16 %v506
        %v511 = vpack.c.b16 %v510, %v509
        %512 = vrot.lane.b32.xlu0 %v289, 126
        %v513 = vpop.permute.xlu0 %512
        %514 = vrot.lane.b32.xlu0 %v290, 126
        %v515 = vpop.permute.xlu0 %514
        %516 = vrot.lane.b32.xlu0 %v291, 126
        %v517 = vpop.permute.xlu0 %516
        %518 = vrot.lane.b32.xlu0 %v292, 126
        %v519 = vpop.permute.xlu0 %518
        %vm520 = vcmask 1031168
        %v521 = vsel %vm520, %v513, %v515
        %v522 = vsel %vm520, %v515, %v517
        %v523 = vsel %vm520, %v517, %v519
        %v528 = vsel %vm308, %v511, 0
        %530 = vmatprep.subr.bf16.mxu0 %v522
        %531 = vmatpush1.bf16.msra.mxu0 %v521
        %532 = vmatprep.subr.bf16.mxu0 0
        %533 = vmatpush1.bf16.msra.mxu0 0
        %534 = vmatprep.subr.bf16.mxu0 0
        %535 = vmatpush1.bf16.msra.mxu0 0
        %536 = vmatprep.subr.bf16.mxu0 0
        %537 = vmatpush1.bf16.msra.mxu0 0
        %538 = vmatprep.subr.bf16.mxu0 0
        %539 = vmatpush1.bf16.msra.mxu0 0
        %540 = vmatprep.subr.bf16.mxu0 0
        %541 = vmatpush1.bf16.msra.mxu0 0
        %542 = vmatprep.subr.bf16.mxu0 0
        %543 = vmatpush1.bf16.msra.mxu0 0
        %544 = vmatprep.subr.bf16.mxu0 0
        %545 = vmatpush1.bf16.msra.mxu0 0
        %546 = vmatprep.subr.bf16.mxu0 0
        %547 = vmatpush1.bf16.msra.mxu0 0
        %548 = vmatprep.subr.bf16.mxu0 0
        %549 = vmatpush1.bf16.msra.mxu0 0
        %550 = vmatprep.subr.bf16.mxu0 0
        %551 = vmatpush1.bf16.msra.mxu0 0
        %552 = vmatprep.subr.bf16.mxu0 0
        %553 = vmatpush1.bf16.msra.mxu0 0
        %554 = vmatprep.subr.bf16.mxu0 0
        %555 = vmatpush1.bf16.msra.mxu0 0
        %556 = vmatprep.subr.bf16.mxu0 0
        %557 = vmatpush1.bf16.msra.mxu0 0
        %558 = vmatprep.subr.bf16.mxu0 0
        %559 = vmatpush1.bf16.msra.mxu0 0
        %560 = vmatprep.subr.bf16.mxu0 0
        %561 = vmatpush1.bf16.msra.mxu0 0
        %562 = vmatprep.mubr.bf16.mxu0 0
        %563 = vmatmul.mubr.bf16.gmra.mrb[0].mxu0 %v528
        %v564 = vpop.f32.mrb[0].mxu0
        %v565 = vadd.f32 0.0, %v564
        %v566 = vpop.f32.mrb[0].mxu0
        %v567 = vadd.f32 0.0, %v566
        %v568 = vpop.f32.mrb[0].mxu0
        %v569 = vadd.f32 0.0, %v568
        %v570 = vpop.f32.mrb[0].mxu0
        %v571 = vadd.f32 0.0, %v570
        %572 = vdwg.mxu0
        %573 = vmatprep.subr.bf16.mxu0 0
        %574 = vmatpush1.bf16.msra.mxu0 %v523
        %575 = vmatprep.subr.bf16.mxu0 0
        %576 = vmatpush1.bf16.msra.mxu0 0
        %577 = vmatprep.subr.bf16.mxu0 0
        %578 = vmatpush1.bf16.msra.mxu0 0
        %579 = vmatprep.subr.bf16.mxu0 0
        %580 = vmatpush1.bf16.msra.mxu0 0
        %581 = vmatprep.subr.bf16.mxu0 0
        %582 = vmatpush1.bf16.msra.mxu0 0
        %583 = vmatprep.subr.bf16.mxu0 0
        %584 = vmatpush1.bf16.msra.mxu0 0
        %585 = vmatprep.subr.bf16.mxu0 0
        %586 = vmatpush1.bf16.msra.mxu0 0
        %587 = vmatprep.subr.bf16.mxu0 0
        %588 = vmatpush1.bf16.msra.mxu0 0
        %589 = vmatprep.subr.bf16.mxu0 0
        %590 = vmatpush1.bf16.msra.mxu0 0
        %591 = vmatprep.subr.bf16.mxu0 0
        %592 = vmatpush1.bf16.msra.mxu0 0
        %593 = vmatprep.subr.bf16.mxu0 0
        %594 = vmatpush1.bf16.msra.mxu0 0
        %595 = vmatprep.subr.bf16.mxu0 0
        %596 = vmatpush1.bf16.msra.mxu0 0
        %597 = vmatprep.subr.bf16.mxu0 0
        %598 = vmatpush1.bf16.msra.mxu0 0
        %599 = vmatprep.subr.bf16.mxu0 0
        %600 = vmatpush1.bf16.msra.mxu0 0
        %601 = vmatprep.subr.bf16.mxu0 0
        %602 = vmatpush1.bf16.msra.mxu0 0
        %603 = vmatprep.subr.bf16.mxu0 0
        %604 = vmatpush1.bf16.msra.mxu0 0
        %605 = vmatprep.mubr.bf16.mxu0 0
        %606 = vmatmul.mubr.bf16.gmra.mrb[0].mxu0 %v528
        %v607 = vpop.f32.mrb[0].mxu0
        %v608 = vadd.f32 0.0, %v607
        %v609 = vpop.f32.mrb[0].mxu0
        %v610 = vpop.f32.mrb[0].mxu0
        %v611 = vadd.f32 0.0, %v610
        %v612 = vpop.f32.mrb[0].mxu0
        %613 = vdwg.mxu0
        %v614 = vadd.f32 %v455, %v565
        %v615 = vadd.f32 %v457, %v567
        %v616 = vadd.f32 %v498, %v608
        %v617 = vadd.f32 %v459, %v569
        %v618 = vadd.f32 %v461, %v571
        %v619 = vadd.f32 %v501, %v611
        %s620 = scalar_lea.vmem [#allocation6], 24
        %v621 = vld [vmem:[%s620] sm:$0xf]
        %v622 = vld [vmem:[%s620 + $0x4] sm:$0xf]
        %v625 = vunpack.c.l.b16 %v621
        %v626 = vunpack.c.l.b16 %v622
        %v627 = vpack.c.b16 %v626, %v625
        %628 = vrot.lane.b32.xlu0 %v289, 112
        %v629 = vpop.permute.xlu0 %628
        %630 = vrot.lane.b32.xlu0 %v290, 112
        %v631 = vpop.permute.xlu0 %630
        %632 = vrot.lane.b32.xlu0 %v291, 112
        %v633 = vpop.permute.xlu0 %632
        %634 = vrot.lane.b32.xlu0 %v292, 112
        %v635 = vpop.permute.xlu0 %634
        %vm636 = vcmask 916480
        %v637 = vsel %vm636, %v629, %v631
        %v638 = vsel %vm636, %v631, %v633
        %v639 = vsel %vm636, %v633, %v635
        %v644 = vsel %vm308, %v627, 0
        %646 = vmatprep.subr.bf16.mxu0 %v638
        %647 = vmatpush1.bf16.msra.mxu0 %v637
        %648 = vmatprep.subr.bf16.mxu0 0
        %649 = vmatpush1.bf16.msra.mxu0 0
        %650 = vmatprep.subr.bf16.mxu0 0
        %651 = vmatpush1.bf16.msra.mxu0 0
        %652 = vmatprep.subr.bf16.mxu0 0
        %653 = vmatpush1.bf16.msra.mxu0 0
        %654 = vmatprep.subr.bf16.mxu0 0
        %655 = vmatpush1.bf16.msra.mxu0 0
        %656 = vmatprep.subr.bf16.mxu0 0
        %657 = vmatpush1.bf16.msra.mxu0 0
        %658 = vmatprep.subr.bf16.mxu0 0
        %659 = vmatpush1.bf16.msra.mxu0 0
        %660 = vmatprep.subr.bf16.mxu0 0
        %661 = vmatpush1.bf16.msra.mxu0 0
        %662 = vmatprep.subr.bf16.mxu0 0
        %663 = vmatpush1.bf16.msra.mxu0 0
        %664 = vmatprep.subr.bf16.mxu0 0
        %665 = vmatpush1.bf16.msra.mxu0 0
        %666 = vmatprep.subr.bf16.mxu0 0
        %667 = vmatpush1.bf16.msra.mxu0 0
        %668 = vmatprep.subr.bf16.mxu0 0
        %669 = vmatpush1.bf16.msra.mxu0 0
        %670 = vmatprep.subr.bf16.mxu0 0
        %671 = vmatpush1.bf16.msra.mxu0 0
        %672 = vmatprep.subr.bf16.mxu0 0
        %673 = vmatpush1.bf16.msra.mxu0 0
        %674 = vmatprep.subr.bf16.mxu0 0
        %675 = vmatpush1.bf16.msra.mxu0 0
        %676 = vmatprep.subr.bf16.mxu0 0
        %677 = vmatpush1.bf16.msra.mxu0 0
        %678 = vmatprep.mubr.bf16.mxu0 0
        %679 = vmatmul.mubr.bf16.gmra.mrb[0].mxu0 %v644
        %v680 = vpop.f32.mrb[0].mxu0
        %v681 = vadd.f32 0.0, %v680
        %v682 = vpop.f32.mrb[0].mxu0
        %v683 = vadd.f32 0.0, %v682
        %v684 = vpop.f32.mrb[0].mxu0
        %v685 = vadd.f32 0.0, %v684
        %v686 = vpop.f32.mrb[0].mxu0
        %v687 = vadd.f32 0.0, %v686
        %688 = vdwg.mxu0
        %689 = vmatprep.subr.bf16.mxu0 0
        %690 = vmatpush1.bf16.msra.mxu0 %v639
        %691 = vmatprep.subr.bf16.mxu0 0
        %692 = vmatpush1.bf16.msra.mxu0 0
        %693 = vmatprep.subr.bf16.mxu0 0
        %694 = vmatpush1.bf16.msra.mxu0 0
        %695 = vmatprep.subr.bf16.mxu0 0
        %696 = vmatpush1.bf16.msra.mxu0 0
        %697 = vmatprep.subr.bf16.mxu0 0
        %698 = vmatpush1.bf16.msra.mxu0 0
        %699 = vmatprep.subr.bf16.mxu0 0
        %700 = vmatpush1.bf16.msra.mxu0 0
        %701 = vmatprep.subr.bf16.mxu0 0
        %702 = vmatpush1.bf16.msra.mxu0 0
        %703 = vmatprep.subr.bf16.mxu0 0
        %704 = vmatpush1.bf16.msra.mxu0 0
        %705 = vmatprep.subr.bf16.mxu0 0
        %706 = vmatpush1.bf16.msra.mxu0 0
        %707 = vmatprep.subr.bf16.mxu0 0
        %708 = vmatpush1.bf16.msra.mxu0 0
        %709 = vmatprep.subr.bf16.mxu0 0
        %710 = vmatpush1.bf16.msra.mxu0 0
        %711 = vmatprep.subr.bf16.mxu0 0
        %712 = vmatpush1.bf16.msra.mxu0 0
        %713 = vmatprep.subr.bf16.mxu0 0
        %714 = vmatpush1.bf16.msra.mxu0 0
        %715 = vmatprep.subr.bf16.mxu0 0
        %716 = vmatpush1.bf16.msra.mxu0 0
        %717 = vmatprep.subr.bf16.mxu0 0
        %718 = vmatpush1.bf16.msra.mxu0 0
        %719 = vmatprep.subr.bf16.mxu0 0
        %720 = vmatpush1.bf16.msra.mxu0 0
        %721 = vmatprep.mubr.bf16.mxu0 0
        %722 = vmatmul.mubr.bf16.gmra.mrb[0].mxu0 %v644
        %v723 = vpop.f32.mrb[0].mxu0
        %v724 = vadd.f32 0.0, %v723
        %v725 = vpop.f32.mrb[0].mxu0
        %v726 = vpop.f32.mrb[0].mxu0
        %v727 = vadd.f32 0.0, %v726
        %v728 = vpop.f32.mrb[0].mxu0
        %729 = vdwg.mxu0
        %v730 = vadd.f32 %v614, %v681
        %v731 = vadd.f32 %v615, %v683
        %v732 = vadd.f32 %v616, %v724
        %v733 = vadd.f32 %v617, %v685
        %v734 = vadd.f32 %v618, %v687
        %v735 = vadd.f32 %v619, %v727
        %s736 = scalar_lea.vmem [#allocation6], 32
        %v737 = vld [vmem:[%s736] sm:$0xf]
        %v738 = vld [vmem:[%s736 + $0x4] sm:$0xf]
        %v741 = vunpack.c.l.b16 %v737
        %v742 = vunpack.c.l.b16 %v738
        %v743 = vpack.c.b16 %v742, %v741
        %744 = vrot.lane.b32.xlu0 %v289, 111
        %v745 = vpop.permute.xlu0 %744
        %746 = vrot.lane.b32.xlu0 %v290, 111
        %v747 = vpop.permute.xlu0 %746
        %748 = vrot.lane.b32.xlu0 %v291, 111
        %v749 = vpop.permute.xlu0 %748
        %750 = vrot.lane.b32.xlu0 %v292, 111
        %v751 = vpop.permute.xlu0 %750
        %vm752 = vcmask 908288
        %v753 = vsel %vm752, %v745, %v747
        %v754 = vsel %vm752, %v747, %v749
        %v755 = vsel %vm752, %v749, %v751
        %v760 = vsel %vm308, %v743, 0
        %762 = vmatprep.subr.bf16.mxu0 %v754
        %763 = vmatpush1.bf16.msra.mxu0 %v753
        %764 = vmatprep.subr.bf16.mxu0 0
        %765 = vmatpush1.bf16.msra.mxu0 0
        %766 = vmatprep.subr.bf16.mxu0 0
        %767 = vmatpush1.bf16.msra.mxu0 0
        %768 = vmatprep.subr.bf16.mxu0 0
        %769 = vmatpush1.bf16.msra.mxu0 0
        %770 = vmatprep.subr.bf16.mxu0 0
        %771 = vmatpush1.bf16.msra.mxu0 0
        %772 = vmatprep.subr.bf16.mxu0 0
        %773 = vmatpush1.bf16.msra.mxu0 0
        %774 = vmatprep.subr.bf16.mxu0 0
        %775 = vmatpush1.bf16.msra.mxu0 0
        %776 = vmatprep.subr.bf16.mxu0 0
        %777 = vmatpush1.bf16.msra.mxu0 0
        %778 = vmatprep.subr.bf16.mxu0 0
        %779 = vmatpush1.bf16.msra.mxu0 0
        %780 = vmatprep.subr.bf16.mxu0 0
        %781 = vmatpush1.bf16.msra.mxu0 0
        %782 = vmatprep.subr.bf16.mxu0 0
        %783 = vmatpush1.bf16.msra.mxu0 0
        %784 = vmatprep.subr.bf16.mxu0 0
        %785 = vmatpush1.bf16.msra.mxu0 0
        %786 = vmatprep.subr.bf16.mxu0 0
        %787 = vmatpush1.bf16.msra.mxu0 0
        %788 = vmatprep.subr.bf16.mxu0 0
        %789 = vmatpush1.bf16.msra.mxu0 0
        %790 = vmatprep.subr.bf16.mxu0 0
        %791 = vmatpush1.bf16.msra.mxu0 0
        %792 = vmatprep.subr.bf16.mxu0 0
        %793 = vmatpush1.bf16.msra.mxu0 0
        %794 = vmatprep.mubr.bf16.mxu0 0
        %795 = vmatmul.mubr.bf16.gmra.mrb[0].mxu0 %v760
        %v796 = vpop.f32.mrb[0].mxu0
        %v797 = vadd.f32 0.0, %v796
        %v798 = vpop.f32.mrb[0].mxu0
        %v799 = vadd.f32 0.0, %v798
        %v800 = vpop.f32.mrb[0].mxu0
        %v801 = vadd.f32 0.0, %v800
        %v802 = vpop.f32.mrb[0].mxu0
        %v803 = vadd.f32 0.0, %v802
        %804 = vdwg.mxu0
        %805 = vmatprep.subr.bf16.mxu0 0
        %806 = vmatpush1.bf16.msra.mxu0 %v755
        %807 = vmatprep.subr.bf16.mxu0 0
        %808 = vmatpush1.bf16.msra.mxu0 0
        %809 = vmatprep.subr.bf16.mxu0 0
        %810 = vmatpush1.bf16.msra.mxu0 0
        %811 = vmatprep.subr.bf16.mxu0 0
        %812 = vmatpush1.bf16.msra.mxu0 0
        %813 = vmatprep.subr.bf16.mxu0 0
        %814 = vmatpush1.bf16.msra.mxu0 0
        %815 = vmatprep.subr.bf16.mxu0 0
        %816 = vmatpush1.bf16.msra.mxu0 0
        %817 = vmatprep.subr.bf16.mxu0 0
        %818 = vmatpush1.bf16.msra.mxu0 0
        %819 = vmatprep.subr.bf16.mxu0 0
        %820 = vmatpush1.bf16.msra.mxu0 0
        %821 = vmatprep.subr.bf16.mxu0 0
        %822 = vmatpush1.bf16.msra.mxu0 0
        %823 = vmatprep.subr.bf16.mxu0 0
        %824 = vmatpush1.bf16.msra.mxu0 0
        %825 = vmatprep.subr.bf16.mxu0 0
        %826 = vmatpush1.bf16.msra.mxu0 0
        %827 = vmatprep.subr.bf16.mxu0 0
        %828 = vmatpush1.bf16.msra.mxu0 0
        %829 = vmatprep.subr.bf16.mxu0 0
        %830 = vmatpush1.bf16.msra.mxu0 0
        %831 = vmatprep.subr.bf16.mxu0 0
        %832 = vmatpush1.bf16.msra.mxu0 0
        %833 = vmatprep.subr.bf16.mxu0 0
        %834 = vmatpush1.bf16.msra.mxu0 0
        %835 = vmatprep.subr.bf16.mxu0 0
        %836 = vmatpush1.bf16.msra.mxu0 0
        %837 = vmatprep.mubr.bf16.mxu0 0
        %838 = vmatmul.mubr.bf16.gmra.mrb[0].mxu0 %v760
        %v839 = vpop.f32.mrb[0].mxu0
        %v840 = vadd.f32 0.0, %v839
        %v841 = vpop.f32.mrb[0].mxu0
        %v842 = vpop.f32.mrb[0].mxu0
        %v843 = vadd.f32 0.0, %v842
        %v844 = vpop.f32.mrb[0].mxu0
        %845 = vdwg.mxu0
        %v846 = vadd.f32 %v730, %v797
        %v847 = vadd.f32 %v731, %v799
        %v848 = vadd.f32 %v732, %v840
        %v849 = vadd.f32 %v733, %v801
        %v850 = vadd.f32 %v734, %v803
        %v851 = vadd.f32 %v735, %v843
        %s852 = scalar_lea.vmem [#allocation6], 40
        %v853 = vld [vmem:[%s852] sm:$0xf]
        %v854 = vld [vmem:[%s852 + $0x4] sm:$0xf]
        %v857 = vunpack.c.l.b16 %v853
        %v858 = vunpack.c.l.b16 %v854
        %v859 = vpack.c.b16 %v858, %v857
        %860 = vrot.lane.b32.xlu0 %v289, 110
        %v861 = vpop.permute.xlu0 %860
        %862 = vrot.lane.b32.xlu0 %v290, 110
        %v863 = vpop.permute.xlu0 %862
        %864 = vrot.lane.b32.xlu0 %v291, 110
        %v865 = vpop.permute.xlu0 %864
        %866 = vrot.lane.b32.xlu0 %v292, 110
        %v867 = vpop.permute.xlu0 %866
        %vm868 = vcmask 900096
        %v869 = vsel %vm868, %v861, %v863
        %v870 = vsel %vm868, %v863, %v865
        %v871 = vsel %vm868, %v865, %v867
        %v876 = vsel %vm308, %v859, 0
        %878 = vmatprep.subr.bf16.mxu0 %v870
        %879 = vmatpush1.bf16.msra.mxu0 %v869
        %880 = vmatprep.subr.bf16.mxu0 0
        %881 = vmatpush1.bf16.msra.mxu0 0
        %882 = vmatprep.subr.bf16.mxu0 0
        %883 = vmatpush1.bf16.msra.mxu0 0
        %884 = vmatprep.subr.bf16.mxu0 0
        %885 = vmatpush1.bf16.msra.mxu0 0
        %886 = vmatprep.subr.bf16.mxu0 0
        %887 = vmatpush1.bf16.msra.mxu0 0
        %888 = vmatprep.subr.bf16.mxu0 0
        %889 = vmatpush1.bf16.msra.mxu0 0
        %890 = vmatprep.subr.bf16.mxu0 0
        %891 = vmatpush1.bf16.msra.mxu0 0
        %892 = vmatprep.subr.bf16.mxu0 0
        %893 = vmatpush1.bf16.msra.mxu0 0
        %894 = vmatprep.subr.bf16.mxu0 0
        %895 = vmatpush1.bf16.msra.mxu0 0
        %896 = vmatprep.subr.bf16.mxu0 0
        %897 = vmatpush1.bf16.msra.mxu0 0
        %898 = vmatprep.subr.bf16.mxu0 0
        %899 = vmatpush1.bf16.msra.mxu0 0
        %900 = vmatprep.subr.bf16.mxu0 0
        %901 = vmatpush1.bf16.msra.mxu0 0
        %902 = vmatprep.subr.bf16.mxu0 0
        %903 = vmatpush1.bf16.msra.mxu0 0
        %904 = vmatprep.subr.bf16.mxu0 0
        %905 = vmatpush1.bf16.msra.mxu0 0
        %906 = vmatprep.subr.bf16.mxu0 0
        %907 = vmatpush1.bf16.msra.mxu0 0
        %908 = vmatprep.subr.bf16.mxu0 0
        %909 = vmatpush1.bf16.msra.mxu0 0
        %910 = vmatprep.mubr.bf16.mxu0 0
        %911 = vmatmul.mubr.bf16.gmra.mrb[0].mxu0 %v876
        %v912 = vpop.f32.mrb[0].mxu0
        %v913 = vadd.f32 0.0, %v912
        %v914 = vpop.f32.mrb[0].mxu0
        %v915 = vadd.f32 0.0, %v914
        %v916 = vpop.f32.mrb[0].mxu0
        %v917 = vadd.f32 0.0, %v916
        %v918 = vpop.f32.mrb[0].mxu0
        %v919 = vadd.f32 0.0, %v918
        %920 = vdwg.mxu0
        %921 = vmatprep.subr.bf16.mxu0 0
        %922 = vmatpush1.bf16.msra.mxu0 %v871
        %923 = vmatprep.subr.bf16.mxu0 0
        %924 = vmatpush1.bf16.msra.mxu0 0
        %925 = vmatprep.subr.bf16.mxu0 0
        %926 = vmatpush1.bf16.msra.mxu0 0
        %927 = vmatprep.subr.bf16.mxu0 0
        %928 = vmatpush1.bf16.msra.mxu0 0
        %929 = vmatprep.subr.bf16.mxu0 0
        %930 = vmatpush1.bf16.msra.mxu0 0
        %931 = vmatprep.subr.bf16.mxu0 0
        %932 = vmatpush1.bf16.msra.mxu0 0
        %933 = vmatprep.subr.bf16.mxu0 0
        %934 = vmatpush1.bf16.msra.mxu0 0
        %935 = vmatprep.subr.bf16.mxu0 0
        %936 = vmatpush1.bf16.msra.mxu0 0
        %937 = vmatprep.subr.bf16.mxu0 0
        %938 = vmatpush1.bf16.msra.mxu0 0
        %939 = vmatprep.subr.bf16.mxu0 0
        %940 = vmatpush1.bf16.msra.mxu0 0
        %941 = vmatprep.subr.bf16.mxu0 0
        %942 = vmatpush1.bf16.msra.mxu0 0
        %943 = vmatprep.subr.bf16.mxu0 0
        %944 = vmatpush1.bf16.msra.mxu0 0
        %945 = vmatprep.subr.bf16.mxu0 0
        %946 = vmatpush1.bf16.msra.mxu0 0
        %947 = vmatprep.subr.bf16.mxu0 0
        %948 = vmatpush1.bf16.msra.mxu0 0
        %949 = vmatprep.subr.bf16.mxu0 0
        %950 = vmatpush1.bf16.msra.mxu0 0
        %951 = vmatprep.subr.bf16.mxu0 0
        %952 = vmatpush1.bf16.msra.mxu0 0
        %953 = vmatprep.mubr.bf16.mxu0 0
        %954 = vmatmul.mubr.bf16.gmra.mrb[0].mxu0 %v876
        %v955 = vpop.f32.mrb[0].mxu0
        %v956 = vadd.f32 0.0, %v955
        %v957 = vpop.f32.mrb[0].mxu0
        %v958 = vpop.f32.mrb[0].mxu0
        %v959 = vadd.f32 0.0, %v958
        %v960 = vpop.f32.mrb[0].mxu0
        %961 = vdwg.mxu0
        %v962 = vadd.f32 %v846, %v913
        %v963 = vadd.f32 %v847, %v915
        %v964 = vadd.f32 %v848, %v956
        %v965 = vadd.f32 %v849, %v917
        %v966 = vadd.f32 %v850, %v919
        %v967 = vadd.f32 %v851, %v959
        %s968 = scalar_lea.vmem [#allocation6], 48
        %v969 = vld [vmem:[%s968] sm:$0xf]
        %v970 = vld [vmem:[%s968 + $0x4] sm:$0xf]
        %v973 = vunpack.c.l.b16 %v969
        %v974 = vunpack.c.l.b16 %v970
        %v975 = vpack.c.b16 %v974, %v973
        %976 = vrot.lane.b32.xlu0 %v289, 96
        %v977 = vpop.permute.xlu0 %976
        %978 = vrot.lane.b32.xlu0 %v290, 96
        %v979 = vpop.permute.xlu0 %978
        %980 = vrot.lane.b32.xlu0 %v291, 96
        %v981 = vpop.permute.xlu0 %980
        %982 = vrot.lane.b32.xlu0 %v292, 96
        %v983 = vpop.permute.xlu0 %982
        %vm984 = vcmask 785408
        %v985 = vsel %vm984, %v977, %v979
        %v986 = vsel %vm984, %v979, %v981
        %v987 = vsel %vm984, %v981, %v983
        %v992 = vsel %vm308, %v975, 0
        %994 = vmatprep.subr.bf16.mxu0 %v986
        %995 = vmatpush1.bf16.msra.mxu0 %v985
        %996 = vmatprep.subr.bf16.mxu0 0
        %997 = vmatpush1.bf16.msra.mxu0 0
        %998 = vmatprep.subr.bf16.mxu0 0
        %999 = vmatpush1.bf16.msra.mxu0 0
        %1000 = vmatprep.subr.bf16.mxu0 0
        %1001 = vmatpush1.bf16.msra.mxu0 0
        %1002 = vmatprep.subr.bf16.mxu0 0
        %1003 = vmatpush1.bf16.msra.mxu0 0
        %1004 = vmatprep.subr.bf16.mxu0 0
        %1005 = vmatpush1.bf16.msra.mxu0 0
        %1006 = vmatprep.subr.bf16.mxu0 0
        %1007 = vmatpush1.bf16.msra.mxu0 0
        %1008 = vmatprep.subr.bf16.mxu0 0
        %1009 = vmatpush1.bf16.msra.mxu0 0
        %1010 = vmatprep.subr.bf16.mxu0 0
        %1011 = vmatpush1.bf16.msra.mxu0 0
        %1012 = vmatprep.subr.bf16.mxu0 0
        %1013 = vmatpush1.bf16.msra.mxu0 0
        %1014 = vmatprep.subr.bf16.mxu0 0
        %1015 = vmatpush1.bf16.msra.mxu0 0
        %1016 = vmatprep.subr.bf16.mxu0 0
        %1017 = vmatpush1.bf16.msra.mxu0 0
        %1018 = vmatprep.subr.bf16.mxu0 0
        %1019 = vmatpush1.bf16.msra.mxu0 0
        %1020 = vmatprep.subr.bf16.mxu0 0
        %1021 = vmatpush1.bf16.msra.mxu0 0
        %1022 = vmatprep.subr.bf16.mxu0 0
        %1023 = vmatpush1.bf16.msra.mxu0 0
        %1024 = vmatprep.subr.bf16.mxu0 0
        %1025 = vmatpush1.bf16.msra.mxu0 0
        %1026 = vmatprep.mubr.bf16.mxu0 0
        %1027 = vmatmul.mubr.bf16.gmra.mrb[0].mxu0 %v992
        %v1028 = vpop.f32.mrb[0].mxu0
        %v1029 = vadd.f32 0.0, %v1028
        %v1030 = vpop.f32.mrb[0].mxu0
        %v1031 = vadd.f32 0.0, %v1030
        %v1032 = vpop.f32.mrb[0].mxu0
        %v1033 = vadd.f32 0.0, %v1032
        %v1034 = vpop.f32.mrb[0].mxu0
        %v1035 = vadd.f32 0.0, %v1034
        %1036 = vdwg.mxu0
        %1037 = vmatprep.subr.bf16.mxu0 0
        %1038 = vmatpush1.bf16.msra.mxu0 %v987
        %1039 = vmatprep.subr.bf16.mxu0 0
        %1040 = vmatpush1.bf16.msra.mxu0 0
        %1041 = vmatprep.subr.bf16.mxu0 0
        %1042 = vmatpush1.bf16.msra.mxu0 0
        %1043 = vmatprep.subr.bf16.mxu0 0
        %1044 = vmatpush1.bf16.msra.mxu0 0
        %1045 = vmatprep.subr.bf16.mxu0 0
        %1046 = vmatpush1.bf16.msra.mxu0 0
        %1047 = vmatprep.subr.bf16.mxu0 0
        %1048 = vmatpush1.bf16.msra.mxu0 0
        %1049 = vmatprep.subr.bf16.mxu0 0
        %1050 = vmatpush1.bf16.msra.mxu0 0
        %1051 = vmatprep.subr.bf16.mxu0 0
        %1052 = vmatpush1.bf16.msra.mxu0 0
        %1053 = vmatprep.subr.bf16.mxu0 0
        %1054 = vmatpush1.bf16.msra.mxu0 0
        %1055 = vmatprep.subr.bf16.mxu0 0
        %1056 = vmatpush1.bf16.msra.mxu0 0
        %1057 = vmatprep.subr.bf16.mxu0 0
        %1058 = vmatpush1.bf16.msra.mxu0 0
        %1059 = vmatprep.subr.bf16.mxu0 0
        %1060 = vmatpush1.bf16.msra.mxu0 0
        %1061 = vmatprep.subr.bf16.mxu0 0
        %1062 = vmatpush1.bf16.msra.mxu0 0
        %1063 = vmatprep.subr.bf16.mxu0 0
        %1064 = vmatpush1.bf16.msra.mxu0 0
        %1065 = vmatprep.subr.bf16.mxu0 0
        %1066 = vmatpush1.bf16.msra.mxu0 0
        %1067 = vmatprep.subr.bf16.mxu0 0
        %1068 = vmatpush1.bf16.msra.mxu0 0
        %1069 = vmatprep.mubr.bf16.mxu0 0
        %1070 = vmatmul.mubr.bf16.gmra.mrb[0].mxu0 %v992
        %v1071 = vpop.f32.mrb[0].mxu0
        %v1072 = vadd.f32 0.0, %v1071
        %v1073 = vpop.f32.mrb[0].mxu0
        %v1074 = vpop.f32.mrb[0].mxu0
        %v1075 = vadd.f32 0.0, %v1074
        %v1076 = vpop.f32.mrb[0].mxu0
        %1077 = vdwg.mxu0
        %v1078 = vadd.f32 %v962, %v1029
        %v1079 = vadd.f32 %v963, %v1031
        %v1080 = vadd.f32 %v964, %v1072
        %v1081 = vadd.f32 %v965, %v1033
        %v1082 = vadd.f32 %v966, %v1035
        %v1083 = vadd.f32 %v967, %v1075
        %s1084 = scalar_lea.vmem [#allocation6], 56
        %v1085 = vld [vmem:[%s1084] sm:$0xf]
        %v1086 = vld [vmem:[%s1084 + $0x4] sm:$0xf]
        %v1089 = vunpack.c.l.b16 %v1085
        %v1090 = vunpack.c.l.b16 %v1086
        %v1091 = vpack.c.b16 %v1090, %v1089
        %1092 = vrot.lane.b32.xlu0 %v289, 95
        %v1093 = vpop.permute.xlu0 %1092
        %1094 = vrot.lane.b32.xlu0 %v290, 95
        %v1095 = vpop.permute.xlu0 %1094
        %1096 = vrot.lane.b32.xlu0 %v291, 95
        %v1097 = vpop.permute.xlu0 %1096
        %1098 = vrot.lane.b32.xlu0 %v292, 95
        %v1099 = vpop.permute.xlu0 %1098
        %vm1100 = vcmask 777216
        %v1101 = vsel %vm1100, %v1093, %v1095
        %v1102 = vsel %vm1100, %v1095, %v1097
        %v1103 = vsel %vm1100, %v1097, %v1099
        %v1108 = vsel %vm308, %v1091, 0
        %1110 = vmatprep.subr.bf16.mxu0 %v1102
        %1111 = vmatpush1.bf16.msra.mxu0 %v1101
        %1112 = vmatprep.subr.bf16.mxu0 0
        %1113 = vmatpush1.bf16.msra.mxu0 0
        %1114 = vmatprep.subr.bf16.mxu0 0
        %1115 = vmatpush1.bf16.msra.mxu0 0
        %1116 = vmatprep.subr.bf16.mxu0 0
        %1117 = vmatpush1.bf16.msra.mxu0 0
        %1118 = vmatprep.subr.bf16.mxu0 0
        %1119 = vmatpush1.bf16.msra.mxu0 0
        %1120 = vmatprep.subr.bf16.mxu0 0
        %1121 = vmatpush1.bf16.msra.mxu0 0
        %1122 = vmatprep.subr.bf16.mxu0 0
        %1123 = vmatpush1.bf16.msra.mxu0 0
        %1124 = vmatprep.subr.bf16.mxu0 0
        %1125 = vmatpush1.bf16.msra.mxu0 0
        %1126 = vmatprep.subr.bf16.mxu0 0
        %1127 = vmatpush1.bf16.msra.mxu0 0
        %1128 = vmatprep.subr.bf16.mxu0 0
        %1129 = vmatpush1.bf16.msra.mxu0 0
        %1130 = vmatprep.subr.bf16.mxu0 0
        %1131 = vmatpush1.bf16.msra.mxu0 0
        %1132 = vmatprep.subr.bf16.mxu0 0
        %1133 = vmatpush1.bf16.msra.mxu0 0
        %1134 = vmatprep.subr.bf16.mxu0 0
        %1135 = vmatpush1.bf16.msra.mxu0 0
        %1136 = vmatprep.subr.bf16.mxu0 0
        %1137 = vmatpush1.bf16.msra.mxu0 0
        %1138 = vmatprep.subr.bf16.mxu0 0
        %1139 = vmatpush1.bf16.msra.mxu0 0
        %1140 = vmatprep.subr.bf16.mxu0 0
        %1141 = vmatpush1.bf16.msra.mxu0 0
        %1142 = vmatprep.mubr.bf16.mxu0 0
        %1143 = vmatmul.mubr.bf16.gmra.mrb[0].mxu0 %v1108
        %v1144 = vpop.f32.mrb[0].mxu0
        %v1145 = vadd.f32 0.0, %v1144
        %v1146 = vpop.f32.mrb[0].mxu0
        %v1147 = vadd.f32 0.0, %v1146
        %v1148 = vpop.f32.mrb[0].mxu0
        %v1149 = vadd.f32 0.0, %v1148
        %v1150 = vpop.f32.mrb[0].mxu0
        %v1151 = vadd.f32 0.0, %v1150
        %1152 = vdwg.mxu0
        %1153 = vmatprep.subr.bf16.mxu0 0
        %1154 = vmatpush1.bf16.msra.mxu0 %v1103
        %1155 = vmatprep.subr.bf16.mxu0 0
        %1156 = vmatpush1.bf16.msra.mxu0 0
        %1157 = vmatprep.subr.bf16.mxu0 0
        %1158 = vmatpush1.bf16.msra.mxu0 0
        %1159 = vmatprep.subr.bf16.mxu0 0
        %1160 = vmatpush1.bf16.msra.mxu0 0
        %1161 = vmatprep.subr.bf16.mxu0 0
        %1162 = vmatpush1.bf16.msra.mxu0 0
        %1163 = vmatprep.subr.bf16.mxu0 0
        %1164 = vmatpush1.bf16.msra.mxu0 0
        %1165 = vmatprep.subr.bf16.mxu0 0
        %1166 = vmatpush1.bf16.msra.mxu0 0
        %1167 = vmatprep.subr.bf16.mxu0 0
        %1168 = vmatpush1.bf16.msra.mxu0 0
        %1169 = vmatprep.subr.bf16.mxu0 0
        %1170 = vmatpush1.bf16.msra.mxu0 0
        %1171 = vmatprep.subr.bf16.mxu0 0
        %1172 = vmatpush1.bf16.msra.mxu0 0
        %1173 = vmatprep.subr.bf16.mxu0 0
        %1174 = vmatpush1.bf16.msra.mxu0 0
        %1175 = vmatprep.subr.bf16.mxu0 0
        %1176 = vmatpush1.bf16.msra.mxu0 0
        %1177 = vmatprep.subr.bf16.mxu0 0
        %1178 = vmatpush1.bf16.msra.mxu0 0
        %1179 = vmatprep.subr.bf16.mxu0 0
        %1180 = vmatpush1.bf16.msra.mxu0 0
        %1181 = vmatprep.subr.bf16.mxu0 0
        %1182 = vmatpush1.bf16.msra.mxu0 0
        %1183 = vmatprep.subr.bf16.mxu0 0
        %1184 = vmatpush1.bf16.msra.mxu0 0
        %1185 = vmatprep.mubr.bf16.mxu0 0
        %1186 = vmatmul.mubr.bf16.gmra.mrb[0].mxu0 %v1108
        %v1187 = vpop.f32.mrb[0].mxu0
        %v1188 = vadd.f32 0.0, %v1187
        %v1189 = vpop.f32.mrb[0].mxu0
        %v1190 = vpop.f32.mrb[0].mxu0
        %v1191 = vadd.f32 0.0, %v1190
        %v1192 = vpop.f32.mrb[0].mxu0
        %1193 = vdwg.mxu0
        %v1194 = vadd.f32 %v1078, %v1145
        %v1195 = vadd.f32 %v1079, %v1147
        %v1196 = vadd.f32 %v1080, %v1188
        %v1197 = vadd.f32 %v1081, %v1149
        %v1198 = vadd.f32 %v1082, %v1151
        %v1199 = vadd.f32 %v1083, %v1191
        %s1200 = scalar_lea.vmem [#allocation6], 64
        %v1201 = vld [vmem:[%s1200] sm:$0xf]
        %v1202 = vld [vmem:[%s1200 + $0x4] sm:$0xf]
        %v1205 = vunpack.c.l.b16 %v1201
        %v1206 = vunpack.c.l.b16 %v1202
        %v1207 = vpack.c.b16 %v1206, %v1205
        %1208 = vrot.lane.b32.xlu0 %v289, 94
        %v1209 = vpop.permute.xlu0 %1208
        %1210 = vrot.lane.b32.xlu0 %v290, 94
        %v1211 = vpop.permute.xlu0 %1210
        %1212 = vrot.lane.b32.xlu0 %v291, 94
        %v1213 = vpop.permute.xlu0 %1212
        %1214 = vrot.lane.b32.xlu0 %v292, 94
        %v1215 = vpop.permute.xlu0 %1214
        %vm1216 = vcmask 769024
        %v1217 = vsel %vm1216, %v1209, %v1211
        %v1218 = vsel %vm1216, %v1211, %v1213
        %v1219 = vsel %vm1216, %v1213, %v1215
        %v1224 = vsel %vm308, %v1207, 0
        %1226 = vmatprep.subr.bf16.mxu0 %v1218
        %1227 = vmatpush1.bf16.msra.mxu0 %v1217
        %1228 = vmatprep.subr.bf16.mxu0 0
        %1229 = vmatpush1.bf16.msra.mxu0 0
        %1230 = vmatprep.subr.bf16.mxu0 0
        %1231 = vmatpush1.bf16.msra.mxu0 0
        %1232 = vmatprep.subr.bf16.mxu0 0
        %1233 = vmatpush1.bf16.msra.mxu0 0
        %1234 = vmatprep.subr.bf16.mxu0 0
        %1235 = vmatpush1.bf16.msra.mxu0 0
        %1236 = vmatprep.subr.bf16.mxu0 0
        %1237 = vmatpush1.bf16.msra.mxu0 0
        %1238 = vmatprep.subr.bf16.mxu0 0
        %1239 = vmatpush1.bf16.msra.mxu0 0
        %1240 = vmatprep.subr.bf16.mxu0 0
        %1241 = vmatpush1.bf16.msra.mxu0 0
        %1242 = vmatprep.subr.bf16.mxu0 0
        %1243 = vmatpush1.bf16.msra.mxu0 0
        %1244 = vmatprep.subr.bf16.mxu0 0
        %1245 = vmatpush1.bf16.msra.mxu0 0
        %1246 = vmatprep.subr.bf16.mxu0 0
        %1247 = vmatpush1.bf16.msra.mxu0 0
        %1248 = vmatprep.subr.bf16.mxu0 0
        %1249 = vmatpush1.bf16.msra.mxu0 0
        %1250 = vmatprep.subr.bf16.mxu0 0
        %1251 = vmatpush1.bf16.msra.mxu0 0
        %1252 = vmatprep.subr.bf16.mxu0 0
        %1253 = vmatpush1.bf16.msra.mxu0 0
        %1254 = vmatprep.subr.bf16.mxu0 0
        %1255 = vmatpush1.bf16.msra.mxu0 0
        %1256 = vmatprep.subr.bf16.mxu0 0
        %1257 = vmatpush1.bf16.msra.mxu0 0
        %1258 = vmatprep.mubr.bf16.mxu0 0
        %1259 = vmatmul.mubr.bf16.gmra.mrb[0].mxu0 %v1224
        %v1260 = vpop.f32.mrb[0].mxu0
        %v1261 = vadd.f32 0.0, %v1260
        %v1262 = vpop.f32.mrb[0].mxu0
        %v1263 = vadd.f32 0.0, %v1262
        %v1264 = vpop.f32.mrb[0].mxu0
        %v1265 = vadd.f32 0.0, %v1264
        %v1266 = vpop.f32.mrb[0].mxu0
        %v1267 = vadd.f32 0.0, %v1266
        %1268 = vdwg.mxu0
        %1269 = vmatprep.subr.bf16.mxu0 0
        %1270 = vmatpush1.bf16.msra.mxu0 %v1219
        %1271 = vmatprep.subr.bf16.mxu0 0
        %1272 = vmatpush1.bf16.msra.mxu0 0
        %1273 = vmatprep.subr.bf16.mxu0 0
        %1274 = vmatpush1.bf16.msra.mxu0 0
        %1275 = vmatprep.subr.bf16.mxu0 0
        %1276 = vmatpush1.bf16.msra.mxu0 0
        %1277 = vmatprep.subr.bf16.mxu0 0
        %1278 = vmatpush1.bf16.msra.mxu0 0
        %1279 = vmatprep.subr.bf16.mxu0 0
        %1280 = vmatpush1.bf16.msra.mxu0 0
        %1281 = vmatprep.subr.bf16.mxu0 0
        %1282 = vmatpush1.bf16.msra.mxu0 0
        %1283 = vmatprep.subr.bf16.mxu0 0
        %1284 = vmatpush1.bf16.msra.mxu0 0
        %1285 = vmatprep.subr.bf16.mxu0 0
        %1286 = vmatpush1.bf16.msra.mxu0 0
        %1287 = vmatprep.subr.bf16.mxu0 0
        %1288 = vmatpush1.bf16.msra.mxu0 0
        %1289 = vmatprep.subr.bf16.mxu0 0
        %1290 = vmatpush1.bf16.msra.mxu0 0
        %1291 = vmatprep.subr.bf16.mxu0 0
        %1292 = vmatpush1.bf16.msra.mxu0 0
        %1293 = vmatprep.subr.bf16.mxu0 0
        %1294 = vmatpush1.bf16.msra.mxu0 0
        %1295 = vmatprep.subr.bf16.mxu0 0
        %1296 = vmatpush1.bf16.msra.mxu0 0
        %1297 = vmatprep.subr.bf16.mxu0 0
        %1298 = vmatpush1.bf16.msra.mxu0 0
        %1299 = vmatprep.subr.bf16.mxu0 0
        %1300 = vmatpush1.bf16.msra.mxu0 0
        %1301 = vmatprep.mubr.bf16.mxu0 0
        %1302 = vmatmul.mubr.bf16.gmra.mrb[0].mxu0 %v1224
        %v1303 = vpop.f32.mrb[0].mxu0
        %v1304 = vadd.f32 0.0, %v1303
        %v1305 = vpop.f32.mrb[0].mxu0
        %v1306 = vpop.f32.mrb[0].mxu0
        %v1307 = vadd.f32 0.0, %v1306
        %v1308 = vpop.f32.mrb[0].mxu0
        %1309 = vdwg.mxu0
        %v1310 = vadd.f32 %v1194, %v1261
        %v1311 = vadd.f32 %v1195, %v1263
        %v1312 = vadd.f32 %v1196, %v1304
        %v1313 = vadd.f32 %v1197, %v1265
        %v1314 = vadd.f32 %v1198, %v1267
        %v1315 = vadd.f32 %v1199, %v1307
        %v1316 = vld [vmem:[%s2] sm:$0xff]
        %v1317 = vld [vmem:[%s2 + $0x8] sm:$0xff]
        %1319 = vset.pattern.permute.xlu0 0
        %1320 = vperm.xlu0 %1319, %v1316
        %v1321 = vpop.permute.xlu0 %1320
        %1324 = vset.pattern.permute.xlu0 0
        %1325 = vperm.xlu0 %1324, %v1317
        %v1326 = vpop.permute.xlu0 %1325
        %v1328 = vadd.f32 %v1310, %v1321
        %v1329 = vadd.f32 %v1311, %v1321
        %v1330 = vadd.f32 %v1312, %v1321
        %v1331 = vadd.f32 %v1313, %v1326
        %v1332 = vadd.f32 %v1314, %v1326
        %v1333 = vadd.f32 %v1315, %v1326
        %v1334 = vmax.f32 %v1328, 0.0
        %v1335 = vmax.f32 %v1329, 0.0
        %v1336 = vmax.f32 %v1330, 0.0
        %v1337 = vmax.f32 %v1331, 0.0
        %v1338 = vmax.f32 %v1332, 0.0
        %v1339 = vmax.f32 %v1333, 0.0
        %v1340 = vpack.c.bf16 %v1337, %v1334
        %v1341 = vpack.c.bf16 %v1338, %v1335
        %v1342 = vpack.c.bf16 %v1339, %v1336
        %1343 = vst [vmem:[#allocation2] sm:$0xff] %v1340
        %1344 = vst [vmem:[#allocation2 + $0x8] sm:$0xff] %v1341
        %1345 = vst [vmem:[#allocation2 + $0x10] sm:$0xff] %v1342
        %v1346 = vld [vmem:[%s3] sm:$0xf]
        %v1347 = vld [vmem:[#allocation2] sm:$0xff]
        %v1348 = vld [vmem:[#allocation2 + $0x8] sm:$0xff]
        %s1349 = scalar_lea.vmem %s3, 4
        %v1350 = vld [vmem:[%s1349] sm:$0xf]
        %v1351 = vld [vmem:[#allocation2] sm:$0xff]
        %v1352 = vld [vmem:[#allocation2 + $0x8] sm:$0xff]
        %v1353 = vld [vmem:[#allocation2 + $0x10] sm:$0xff]
        %1357 = vrot.lane.b32.xlu0 %v1351, 127
        %v1358 = vpop.permute.xlu0 %1357
        %1359 = vrot.lane.b32.xlu0 %v1352, 127
        %v1360 = vpop.permute.xlu0 %1359
        %1361 = vrot.lane.b32.xlu0 %v1353, 127
        %v1362 = vpop.permute.xlu0 %1361
        %v1363 = vsel %vm301, %v1358, %v1360
        %v1364 = vsel %vm301, %v1360, %v1362
        %v1368 = vsel %vm308, %v1350, 0
        %1370 = vmatprep.subr.bf16.mxu0 %v1364
        %1371 = vmatpush1.bf16.msra.mxu0 %v1363
        %1372 = vmatprep.subr.bf16.mxu0 0
        %1373 = vmatpush1.bf16.msra.mxu0 0
        %1374 = vmatprep.subr.bf16.mxu0 0
        %1375 = vmatpush1.bf16.msra.mxu0 0
        %1376 = vmatprep.subr.bf16.mxu0 0
        %1377 = vmatpush1.bf16.msra.mxu0 0
        %1378 = vmatprep.subr.bf16.mxu0 0
        %1379 = vmatpush1.bf16.msra.mxu0 0
        %1380 = vmatprep.subr.bf16.mxu0 0
        %1381 = vmatpush1.bf16.msra.mxu0 0
        %1382 = vmatprep.subr.bf16.mxu0 0
        %1383 = vmatpush1.bf16.msra.mxu0 0
        %1384 = vmatprep.subr.bf16.mxu0 0
        %1385 = vmatpush1.bf16.msra.mxu0 0
        %1386 = vmatprep.subr.bf16.mxu0 0
        %1387 = vmatpush1.bf16.msra.mxu0 0
        %1388 = vmatprep.subr.bf16.mxu0 0
        %1389 = vmatpush1.bf16.msra.mxu0 0
        %1390 = vmatprep.subr.bf16.mxu0 0
        %1391 = vmatpush1.bf16.msra.mxu0 0
        %1392 = vmatprep.subr.bf16.mxu0 0
        %1393 = vmatpush1.bf16.msra.mxu0 0
        %1394 = vmatprep.subr.bf16.mxu0 0
        %1395 = vmatpush1.bf16.msra.mxu0 0
        %1396 = vmatprep.subr.bf16.mxu0 0
        %1397 = vmatpush1.bf16.msra.mxu0 0
        %1398 = vmatprep.subr.bf16.mxu0 0
        %1399 = vmatpush1.bf16.msra.mxu0 0
        %1400 = vmatprep.subr.bf16.mxu0 0
        %1401 = vmatpush1.bf16.msra.mxu0 0
        %1402 = vmatprep.mubr.bf16.mxu0 0
        %1403 = vmatmul.mubr.bf16.gmra.mrb[0].mxu0 %v1368
        %v1404 = vpop.f32.mrb[0].mxu0
        %v1405 = vadd.f32 0.0, %v1404
        %v1406 = vpop.f32.mrb[0].mxu0
        %v1407 = vadd.f32 0.0, %v1406
        %v1408 = vpop.f32.mrb[0].mxu0
        %v1409 = vpop.f32.mrb[0].mxu0
        %1410 = vdwg.mxu0
        %v1412 = vsel %vm308, %v1346, 0
        %1414 = vmatprep.subr.bf16.mxu0 %v1348
        %1415 = vmatpush1.bf16.msra.mxu0 %v1347
        %1416 = vmatprep.subr.bf16.mxu0 0
        %1417 = vmatpush1.bf16.msra.mxu0 0
        %1418 = vmatprep.subr.bf16.mxu0 0
        %1419 = vmatpush1.bf16.msra.mxu0 0
        %1420 = vmatprep.subr.bf16.mxu0 0
        %1421 = vmatpush1.bf16.msra.mxu0 0
        %1422 = vmatprep.subr.bf16.mxu0 0
        %1423 = vmatpush1.bf16.msra.mxu0 0
        %1424 = vmatprep.subr.bf16.mxu0 0
        %1425 = vmatpush1.bf16.msra.mxu0 0
        %1426 = vmatprep.subr.bf16.mxu0 0
        %1427 = vmatpush1.bf16.msra.mxu0 0
        %1428 = vmatprep.subr.bf16.mxu0 0
        %1429 = vmatpush1.bf16.msra.mxu0 0
        %1430 = vmatprep.subr.bf16.mxu0 0
        %1431 = vmatpush1.bf16.msra.mxu0 0
        %1432 = vmatprep.subr.bf16.mxu0 0
        %1433 = vmatpush1.bf16.msra.mxu0 0
        %1434 = vmatprep.subr.bf16.mxu0 0
        %1435 = vmatpush1.bf16.msra.mxu0 0
        %1436 = vmatprep.subr.bf16.mxu0 0
        %1437 = vmatpush1.bf16.msra.mxu0 0
        %1438 = vmatprep.subr.bf16.mxu0 0
        %1439 = vmatpush1.bf16.msra.mxu0 0
        %1440 = vmatprep.subr.bf16.mxu0 0
        %1441 = vmatpush1.bf16.msra.mxu0 0
        %1442 = vmatprep.subr.bf16.mxu0 0
        %1443 = vmatpush1.bf16.msra.mxu0 0
        %1444 = vmatprep.subr.bf16.mxu0 0
        %1445 = vmatpush1.bf16.msra.mxu0 0
        %1446 = vmatprep.mubr.bf16.mxu0 0
        %1447 = vmatmul.mubr.bf16.gmra.mrb[0].mxu0 %v1412
        %v1448 = vpop.f32.mrb[0].mxu0
        %v1449 = vadd.f32 %v1405, %v1448
        %v1450 = vpop.f32.mrb[0].mxu0
        %v1451 = vadd.f32 %v1407, %v1450
        %v1452 = vpop.f32.mrb[0].mxu0
        %v1453 = vpop.f32.mrb[0].mxu0
        %1454 = vdwg.mxu0
        %s1455 = scalar_lea.vmem %s3, 8
        %v1456 = vld [vmem:[%s1455] sm:$0xf]
        %1457 = vrot.lane.b32.xlu0 %v1351, 126
        %v1458 = vpop.permute.xlu0 %1457
        %1459 = vrot.lane.b32.xlu0 %v1352, 126
        %v1460 = vpop.permute.xlu0 %1459
        %1461 = vrot.lane.b32.xlu0 %v1353, 126
        %v1462 = vpop.permute.xlu0 %1461
        %v1463 = vsel %vm520, %v1458, %v1460
        %v1464 = vsel %vm520, %v1460, %v1462
        %v1468 = vsel %vm308, %v1456, 0
        %1470 = vmatprep.subr.bf16.mxu0 %v1464
        %1471 = vmatpush1.bf16.msra.mxu0 %v1463
        %1472 = vmatprep.subr.bf16.mxu0 0
        %1473 = vmatpush1.bf16.msra.mxu0 0
        %1474 = vmatprep.subr.bf16.mxu0 0
        %1475 = vmatpush1.bf16.msra.mxu0 0
        %1476 = vmatprep.subr.bf16.mxu0 0
        %1477 = vmatpush1.bf16.msra.mxu0 0
        %1478 = vmatprep.subr.bf16.mxu0 0
        %1479 = vmatpush1.bf16.msra.mxu0 0
        %1480 = vmatprep.subr.bf16.mxu0 0
        %1481 = vmatpush1.bf16.msra.mxu0 0
        %1482 = vmatprep.subr.bf16.mxu0 0
        %1483 = vmatpush1.bf16.msra.mxu0 0
        %1484 = vmatprep.subr.bf16.mxu0 0
        %1485 = vmatpush1.bf16.msra.mxu0 0
        %1486 = vmatprep.subr.bf16.mxu0 0
        %1487 = vmatpush1.bf16.msra.mxu0 0
        %1488 = vmatprep.subr.bf16.mxu0 0
        %1489 = vmatpush1.bf16.msra.mxu0 0
        %1490 = vmatprep.subr.bf16.mxu0 0
        %1491 = vmatpush1.bf16.msra.mxu0 0
        %1492 = vmatprep.subr.bf16.mxu0 0
        %1493 = vmatpush1.bf16.msra.mxu0 0
        %1494 = vmatprep.subr.bf16.mxu0 0
        %1495 = vmatpush1.bf16.msra.mxu0 0
        %1496 = vmatprep.subr.bf16.mxu0 0
        %1497 = vmatpush1.bf16.msra.mxu0 0
        %1498 = vmatprep.subr.bf16.mxu0 0
        %1499 = vmatpush1.bf16.msra.mxu0 0
        %1500 = vmatprep.subr.bf16.mxu0 0
        %1501 = vmatpush1.bf16.msra.mxu0 0
        %1502 = vmatprep.mubr.bf16.mxu0 0
        %1503 = vmatmul.mubr.bf16.gmra.mrb[0].mxu0 %v1468
        %v1504 = vpop.f32.mrb[0].mxu0
        %v1505 = vadd.f32 0.0, %v1504
        %v1506 = vpop.f32.mrb[0].mxu0
        %v1507 = vadd.f32 0.0, %v1506
        %v1508 = vpop.f32.mrb[0].mxu0
        %v1509 = vpop.f32.mrb[0].mxu0
        %1510 = vdwg.mxu0
        %v1511 = vadd.f32 %v1449, %v1505
        %v1512 = vadd.f32 %v1451, %v1507
        %s1513 = scalar_lea.vmem %s3, 12
        %v1514 = vld [vmem:[%s1513] sm:$0xf]
        %1515 = vrot.lane.b32.xlu0 %v1351, 112
        %v1516 = vpop.permute.xlu0 %1515
        %1517 = vrot.lane.b32.xlu0 %v1352, 112
        %v1518 = vpop.permute.xlu0 %1517
        %1519 = vrot.lane.b32.xlu0 %v1353, 112
        %v1520 = vpop.permute.xlu0 %1519
        %v1521 = vsel %vm636, %v1516, %v1518
        %v1522 = vsel %vm636, %v1518, %v1520
        %v1526 = vsel %vm308, %v1514, 0
        %1528 = vmatprep.subr.bf16.mxu0 %v1522
        %1529 = vmatpush1.bf16.msra.mxu0 %v1521
        %1530 = vmatprep.subr.bf16.mxu0 0
        %1531 = vmatpush1.bf16.msra.mxu0 0
        %1532 = vmatprep.subr.bf16.mxu0 0
        %1533 = vmatpush1.bf16.msra.mxu0 0
        %1534 = vmatprep.subr.bf16.mxu0 0
        %1535 = vmatpush1.bf16.msra.mxu0 0
        %1536 = vmatprep.subr.bf16.mxu0 0
        %1537 = vmatpush1.bf16.msra.mxu0 0
        %1538 = vmatprep.subr.bf16.mxu0 0
        %1539 = vmatpush1.bf16.msra.mxu0 0
        %1540 = vmatprep.subr.bf16.mxu0 0
        %1541 = vmatpush1.bf16.msra.mxu0 0
        %1542 = vmatprep.subr.bf16.mxu0 0
        %1543 = vmatpush1.bf16.msra.mxu0 0
        %1544 = vmatprep.subr.bf16.mxu0 0
        %1545 = vmatpush1.bf16.msra.mxu0 0
        %1546 = vmatprep.subr.bf16.mxu0 0
        %1547 = vmatpush1.bf16.msra.mxu0 0
        %1548 = vmatprep.subr.bf16.mxu0 0
        %1549 = vmatpush1.bf16.msra.mxu0 0
        %1550 = vmatprep.subr.bf16.mxu0 0
        %1551 = vmatpush1.bf16.msra.mxu0 0
        %1552 = vmatprep.subr.bf16.mxu0 0
        %1553 = vmatpush1.bf16.msra.mxu0 0
        %1554 = vmatprep.subr.bf16.mxu0 0
        %1555 = vmatpush1.bf16.msra.mxu0 0
        %1556 = vmatprep.subr.bf16.mxu0 0
        %1557 = vmatpush1.bf16.msra.mxu0 0
        %1558 = vmatprep.subr.bf16.mxu0 0
        %1559 = vmatpush1.bf16.msra.mxu0 0
        %1560 = vmatprep.mubr.bf16.mxu0 0
        %1561 = vmatmul.mubr.bf16.gmra.mrb[0].mxu0 %v1526
        %v1562 = vpop.f32.mrb[0].mxu0
        %v1563 = vadd.f32 0.0, %v1562
        %v1564 = vpop.f32.mrb[0].mxu0
        %v1565 = vadd.f32 0.0, %v1564
        %v1566 = vpop.f32.mrb[0].mxu0
        %v1567 = vpop.f32.mrb[0].mxu0
        %1568 = vdwg.mxu0
        %v1569 = vadd.f32 %v1511, %v1563
        %v1570 = vadd.f32 %v1512, %v1565
        %s1571 = scalar_lea.vmem %s3, 16
        %v1572 = vld [vmem:[%s1571] sm:$0xf]
        %1573 = vrot.lane.b32.xlu0 %v1351, 111
        %v1574 = vpop.permute.xlu0 %1573
        %1575 = vrot.lane.b32.xlu0 %v1352, 111
        %v1576 = vpop.permute.xlu0 %1575
        %1577 = vrot.lane.b32.xlu0 %v1353, 111
        %v1578 = vpop.permute.xlu0 %1577
        %v1579 = vsel %vm752, %v1574, %v1576
        %v1580 = vsel %vm752, %v1576, %v1578
        %v1584 = vsel %vm308, %v1572, 0
        %1586 = vmatprep.subr.bf16.mxu0 %v1580
        %1587 = vmatpush1.bf16.msra.mxu0 %v1579
        %1588 = vmatprep.subr.bf16.mxu0 0
        %1589 = vmatpush1.bf16.msra.mxu0 0
        %1590 = vmatprep.subr.bf16.mxu0 0
        %1591 = vmatpush1.bf16.msra.mxu0 0
        %1592 = vmatprep.subr.bf16.mxu0 0
        %1593 = vmatpush1.bf16.msra.mxu0 0
        %1594 = vmatprep.subr.bf16.mxu0 0
        %1595 = vmatpush1.bf16.msra.mxu0 0
        %1596 = vmatprep.subr.bf16.mxu0 0
        %1597 = vmatpush1.bf16.msra.mxu0 0
        %1598 = vmatprep.subr.bf16.mxu0 0
        %1599 = vmatpush1.bf16.msra.mxu0 0
        %1600 = vmatprep.subr.bf16.mxu0 0
        %1601 = vmatpush1.bf16.msra.mxu0 0
        %1602 = vmatprep.subr.bf16.mxu0 0
        %1603 = vmatpush1.bf16.msra.mxu0 0
        %1604 = vmatprep.subr.bf16.mxu0 0
        %1605 = vmatpush1.bf16.msra.mxu0 0
        %1606 = vmatprep.subr.bf16.mxu0 0
        %1607 = vmatpush1.bf16.msra.mxu0 0
        %1608 = vmatprep.subr.bf16.mxu0 0
        %1609 = vmatpush1.bf16.msra.mxu0 0
        %1610 = vmatprep.subr.bf16.mxu0 0
        %1611 = vmatpush1.bf16.msra.mxu0 0
        %1612 = vmatprep.subr.bf16.mxu0 0
        %1613 = vmatpush1.bf16.msra.mxu0 0
        %1614 = vmatprep.subr.bf16.mxu0 0
        %1615 = vmatpush1.bf16.msra.mxu0 0
        %1616 = vmatprep.subr.bf16.mxu0 0
        %1617 = vmatpush1.bf16.msra.mxu0 0
        %1618 = vmatprep.mubr.bf16.mxu0 0
        %1619 = vmatmul.mubr.bf16.gmra.mrb[0].mxu0 %v1584
        %v1620 = vpop.f32.mrb[0].mxu0
        %v1621 = vadd.f32 0.0, %v1620
        %v1622 = vpop.f32.mrb[0].mxu0
        %v1623 = vadd.f32 0.0, %v1622
        %v1624 = vpop.f32.mrb[0].mxu0
        %v1625 = vpop.f32.mrb[0].mxu0
        %1626 = vdwg.mxu0
        %v1627 = vadd.f32 %v1569, %v1621
        %v1628 = vadd.f32 %v1570, %v1623
        %s1629 = scalar_lea.vmem %s3, 20
        %v1630 = vld [vmem:[%s1629] sm:$0xf]
        %1631 = vrot.lane.b32.xlu0 %v1351, 110
        %v1632 = vpop.permute.xlu0 %1631
        %1633 = vrot.lane.b32.xlu0 %v1352, 110
        %v1634 = vpop.permute.xlu0 %1633
        %1635 = vrot.lane.b32.xlu0 %v1353, 110
        %v1636 = vpop.permute.xlu0 %1635
        %v1637 = vsel %vm868, %v1632, %v1634
        %v1638 = vsel %vm868, %v1634, %v1636
        %v1642 = vsel %vm308, %v1630, 0
        %1644 = vmatprep.subr.bf16.mxu0 %v1638
        %1645 = vmatpush1.bf16.msra.mxu0 %v1637
        %1646 = vmatprep.subr.bf16.mxu0 0
        %1647 = vmatpush1.bf16.msra.mxu0 0
        %1648 = vmatprep.subr.bf16.mxu0 0
        %1649 = vmatpush1.bf16.msra.mxu0 0
        %1650 = vmatprep.subr.bf16.mxu0 0
        %1651 = vmatpush1.bf16.msra.mxu0 0
        %1652 = vmatprep.subr.bf16.mxu0 0
        %1653 = vmatpush1.bf16.msra.mxu0 0
        %1654 = vmatprep.subr.bf16.mxu0 0
        %1655 = vmatpush1.bf16.msra.mxu0 0
        %1656 = vmatprep.subr.bf16.mxu0 0
        %1657 = vmatpush1.bf16.msra.mxu0 0
        %1658 = vmatprep.subr.bf16.mxu0 0
        %1659 = vmatpush1.bf16.msra.mxu0 0
        %1660 = vmatprep.subr.bf16.mxu0 0
        %1661 = vmatpush1.bf16.msra.mxu0 0
        %1662 = vmatprep.subr.bf16.mxu0 0
        %1663 = vmatpush1.bf16.msra.mxu0 0
        %1664 = vmatprep.subr.bf16.mxu0 0
        %1665 = vmatpush1.bf16.msra.mxu0 0
        %1666 = vmatprep.subr.bf16.mxu0 0
        %1667 = vmatpush1.bf16.msra.mxu0 0
        %1668 = vmatprep.subr.bf16.mxu0 0
        %1669 = vmatpush1.bf16.msra.mxu0 0
        %1670 = vmatprep.subr.bf16.mxu0 0
        %1671 = vmatpush1.bf16.msra.mxu0 0
        %1672 = vmatprep.subr.bf16.mxu0 0
        %1673 = vmatpush1.bf16.msra.mxu0 0
        %1674 = vmatprep.subr.bf16.mxu0 0
        %1675 = vmatpush1.bf16.msra.mxu0 0
        %1676 = vmatprep.mubr.bf16.mxu0 0
        %1677 = vmatmul.mubr.bf16.gmra.mrb[0].mxu0 %v1642
        %v1678 = vpop.f32.mrb[0].mxu0
        %v1679 = vadd.f32 0.0, %v1678
        %v1680 = vpop.f32.mrb[0].mxu0
        %v1681 = vadd.f32 0.0, %v1680
        %v1682 = vpop.f32.mrb[0].mxu0
        %v1683 = vpop.f32.mrb[0].mxu0
        %1684 = vdwg.mxu0
        %v1685 = vadd.f32 %v1627, %v1679
        %v1686 = vadd.f32 %v1628, %v1681
        %s1687 = scalar_lea.vmem %s3, 24
        %v1688 = vld [vmem:[%s1687] sm:$0xf]
        %1689 = vrot.lane.b32.xlu0 %v1351, 96
        %v1690 = vpop.permute.xlu0 %1689
        %1691 = vrot.lane.b32.xlu0 %v1352, 96
        %v1692 = vpop.permute.xlu0 %1691
        %1693 = vrot.lane.b32.xlu0 %v1353, 96
        %v1694 = vpop.permute.xlu0 %1693
        %v1695 = vsel %vm984, %v1690, %v1692
        %v1696 = vsel %vm984, %v1692, %v1694
        %v1700 = vsel %vm308, %v1688, 0
        %1702 = vmatprep.subr.bf16.mxu0 %v1696
        %1703 = vmatpush1.bf16.msra.mxu0 %v1695
        %1704 = vmatprep.subr.bf16.mxu0 0
        %1705 = vmatpush1.bf16.msra.mxu0 0
        %1706 = vmatprep.subr.bf16.mxu0 0
        %1707 = vmatpush1.bf16.msra.mxu0 0
        %1708 = vmatprep.subr.bf16.mxu0 0
        %1709 = vmatpush1.bf16.msra.mxu0 0
        %1710 = vmatprep.subr.bf16.mxu0 0
        %1711 = vmatpush1.bf16.msra.mxu0 0
        %1712 = vmatprep.subr.bf16.mxu0 0
        %1713 = vmatpush1.bf16.msra.mxu0 0
        %1714 = vmatprep.subr.bf16.mxu0 0
        %1715 = vmatpush1.bf16.msra.mxu0 0
        %1716 = vmatprep.subr.bf16.mxu0 0
        %1717 = vmatpush1.bf16.msra.mxu0 0
        %1718 = vmatprep.subr.bf16.mxu0 0
        %1719 = vmatpush1.bf16.msra.mxu0 0
        %1720 = vmatprep.subr.bf16.mxu0 0
        %1721 = vmatpush1.bf16.msra.mxu0 0
        %1722 = vmatprep.subr.bf16.mxu0 0
        %1723 = vmatpush1.bf16.msra.mxu0 0
        %1724 = vmatprep.subr.bf16.mxu0 0
        %1725 = vmatpush1.bf16.msra.mxu0 0
        %1726 = vmatprep.subr.bf16.mxu0 0
        %1727 = vmatpush1.bf16.msra.mxu0 0
        %1728 = vmatprep.subr.bf16.mxu0 0
        %1729 = vmatpush1.bf16.msra.mxu0 0
        %1730 = vmatprep.subr.bf16.mxu0 0
        %1731 = vmatpush1.bf16.msra.mxu0 0
        %1732 = vmatprep.subr.bf16.mxu0 0
        %1733 = vmatpush1.bf16.msra.mxu0 0
        %1734 = vmatprep.mubr.bf16.mxu0 0
        %1735 = vmatmul.mubr.bf16.gmra.mrb[0].mxu0 %v1700
        %v1736 = vpop.f32.mrb[0].mxu0
        %v1737 = vadd.f32 0.0, %v1736
        %v1738 = vpop.f32.mrb[0].mxu0
        %v1739 = vadd.f32 0.0, %v1738
        %v1740 = vpop.f32.mrb[0].mxu0
        %v1741 = vpop.f32.mrb[0].mxu0
        %1742 = vdwg.mxu0
        %v1743 = vadd.f32 %v1685, %v1737
        %v1744 = vadd.f32 %v1686, %v1739
        %s1745 = scalar_lea.vmem %s3, 28
        %v1746 = vld [vmem:[%s1745] sm:$0xf]
        %1747 = vrot.lane.b32.xlu0 %v1351, 95
        %v1748 = vpop.permute.xlu0 %1747
        %1749 = vrot.lane.b32.xlu0 %v1352, 95
        %v1750 = vpop.permute.xlu0 %1749
        %1751 = vrot.lane.b32.xlu0 %v1353, 95
        %v1752 = vpop.permute.xlu0 %1751
        %v1753 = vsel %vm1100, %v1748, %v1750
        %v1754 = vsel %vm1100, %v1750, %v1752
        %v1758 = vsel %vm308, %v1746, 0
        %1760 = vmatprep.subr.bf16.mxu0 %v1754
        %1761 = vmatpush1.bf16.msra.mxu0 %v1753
        %1762 = vmatprep.subr.bf16.mxu0 0
        %1763 = vmatpush1.bf16.msra.mxu0 0
        %1764 = vmatprep.subr.bf16.mxu0 0
        %1765 = vmatpush1.bf16.msra.mxu0 0
        %1766 = vmatprep.subr.bf16.mxu0 0
        %1767 = vmatpush1.bf16.msra.mxu0 0
        %1768 = vmatprep.subr.bf16.mxu0 0
        %1769 = vmatpush1.bf16.msra.mxu0 0
        %1770 = vmatprep.subr.bf16.mxu0 0
        %1771 = vmatpush1.bf16.msra.mxu0 0
        %1772 = vmatprep.subr.bf16.mxu0 0
        %1773 = vmatpush1.bf16.msra.mxu0 0
        %1774 = vmatprep.subr.bf16.mxu0 0
        %1775 = vmatpush1.bf16.msra.mxu0 0
        %1776 = vmatprep.subr.bf16.mxu0 0
        %1777 = vmatpush1.bf16.msra.mxu0 0
        %1778 = vmatprep.subr.bf16.mxu0 0
        %1779 = vmatpush1.bf16.msra.mxu0 0
        %1780 = vmatprep.subr.bf16.mxu0 0
        %1781 = vmatpush1.bf16.msra.mxu0 0
        %1782 = vmatprep.subr.bf16.mxu0 0
        %1783 = vmatpush1.bf16.msra.mxu0 0
        %1784 = vmatprep.subr.bf16.mxu0 0
        %1785 = vmatpush1.bf16.msra.mxu0 0
        %1786 = vmatprep.subr.bf16.mxu0 0
        %1787 = vmatpush1.bf16.msra.mxu0 0
        %1788 = vmatprep.subr.bf16.mxu0 0
        %1789 = vmatpush1.bf16.msra.mxu0 0
        %1790 = vmatprep.subr.bf16.mxu0 0
        %1791 = vmatpush1.bf16.msra.mxu0 0
        %1792 = vmatprep.mubr.bf16.mxu0 0
        %1793 = vmatmul.mubr.bf16.gmra.mrb[0].mxu0 %v1758
        %v1794 = vpop.f32.mrb[0].mxu0
        %v1795 = vadd.f32 0.0, %v1794
        %v1796 = vpop.f32.mrb[0].mxu0
        %v1797 = vadd.f32 0.0, %v1796
        %v1798 = vpop.f32.mrb[0].mxu0
        %v1799 = vpop.f32.mrb[0].mxu0
        %1800 = vdwg.mxu0
        %v1801 = vadd.f32 %v1743, %v1795
        %v1802 = vadd.f32 %v1744, %v1797
        %s1803 = scalar_lea.vmem %s3, 32
        %v1804 = vld [vmem:[%s1803] sm:$0xf]
        %1805 = vrot.lane.b32.xlu0 %v1351, 94
        %v1806 = vpop.permute.xlu0 %1805
        %1807 = vrot.lane.b32.xlu0 %v1352, 94
        %v1808 = vpop.permute.xlu0 %1807
        %1809 = vrot.lane.b32.xlu0 %v1353, 94
        %v1810 = vpop.permute.xlu0 %1809
        %v1811 = vsel %vm1216, %v1806, %v1808
        %v1812 = vsel %vm1216, %v1808, %v1810
        %v1816 = vsel %vm308, %v1804, 0
        %1818 = vmatprep.subr.bf16.mxu0 %v1812
        %1819 = vmatpush1.bf16.msra.mxu0 %v1811
        %1820 = vmatprep.subr.bf16.mxu0 0
        %1821 = vmatpush1.bf16.msra.mxu0 0
        %1822 = vmatprep.subr.bf16.mxu0 0
        %1823 = vmatpush1.bf16.msra.mxu0 0
        %1824 = vmatprep.subr.bf16.mxu0 0
        %1825 = vmatpush1.bf16.msra.mxu0 0
        %1826 = vmatprep.subr.bf16.mxu0 0
        %1827 = vmatpush1.bf16.msra.mxu0 0
        %1828 = vmatprep.subr.bf16.mxu0 0
        %1829 = vmatpush1.bf16.msra.mxu0 0
        %1830 = vmatprep.subr.bf16.mxu0 0
        %1831 = vmatpush1.bf16.msra.mxu0 0
        %1832 = vmatprep.subr.bf16.mxu0 0
        %1833 = vmatpush1.bf16.msra.mxu0 0
        %1834 = vmatprep.subr.bf16.mxu0 0
        %1835 = vmatpush1.bf16.msra.mxu0 0
        %1836 = vmatprep.subr.bf16.mxu0 0
        %1837 = vmatpush1.bf16.msra.mxu0 0
        %1838 = vmatprep.subr.bf16.mxu0 0
        %1839 = vmatpush1.bf16.msra.mxu0 0
        %1840 = vmatprep.subr.bf16.mxu0 0
        %1841 = vmatpush1.bf16.msra.mxu0 0
        %1842 = vmatprep.subr.bf16.mxu0 0
        %1843 = vmatpush1.bf16.msra.mxu0 0
        %1844 = vmatprep.subr.bf16.mxu0 0
        %1845 = vmatpush1.bf16.msra.mxu0 0
        %1846 = vmatprep.subr.bf16.mxu0 0
        %1847 = vmatpush1.bf16.msra.mxu0 0
        %1848 = vmatprep.subr.bf16.mxu0 0
        %1849 = vmatpush1.bf16.msra.mxu0 0
        %1850 = vmatprep.mubr.bf16.mxu0 0
        %1851 = vmatmul.mubr.bf16.gmra.mrb[0].mxu0 %v1816
        %v1852 = vpop.f32.mrb[0].mxu0
        %v1853 = vadd.f32 0.0, %v1852
        %v1854 = vpop.f32.mrb[0].mxu0
        %v1855 = vadd.f32 0.0, %v1854
        %v1856 = vpop.f32.mrb[0].mxu0
        %v1857 = vpop.f32.mrb[0].mxu0
        %1858 = vdwg.mxu0
        %v1859 = vadd.f32 %v1801, %v1853
        %v1860 = vadd.f32 %v1802, %v1855
        %v1861 = vld [vmem:[%s4] sm:$0xff]
        %1863 = vset.pattern.permute.xlu0 0
        %1864 = vperm.xlu0 %1863, %v1861
        %v1865 = vpop.permute.xlu0 %1864
        %v1867 = vadd.f32 %v1859, %v1865
        %v1868 = vadd.f32 %v1860, %v1865
        %1869 = vst [vmem:[%s257] sm:$0xff] %v1867
        %1870 = vst [vmem:[%s257 + $0x8] sm:$0xff] %v1868
        %s1871 = sand.u32 %s141, 1
        %s1872 = scalar_lea.sflag [#allocation5], %s1871
        %s1873 = sand.u32 %s141, 1
        %s1874 = smul.addr %s1873, 16
        %s1875 = scalar_lea.vmem [#allocation8], %s1874
        // Predicated region
        $region49: #{tpu_custom_call.1} parent=39 // pred_check
          %p1876 = pneg %p151
        $region50: #{tpu_custom_call.1} parent=39 // pred_check_branch
          %1878 = sbr.rel (%p1876) target = $region52
        $region51: #{tpu_custom_call.1} parent=39 // pred_region
          %s1880 = ssub.s32 256, 256
          %1881 = vsyncadd %s1872, %s1880
          %s1882 = smul.addr %s23, 2
          %s1883 = smul.addr %s1882, 128
          %s1884 = scalar_lea.hbm %s5, %s1883
          %s1886 = sshll.u32 %s1875, 4
          %s1887 = int_to_ptr.vmem [resolvable:$true] %s1886
          %1889 = dma.vmem_to_hbm [thread:$0]  %s1887, 256, %s1884, %s1872
        $region52: #{tpu_custom_call.1} parent=39 // pred_fallthru
          _
      $region40: #{tpu_custom_call.1} parent=5 // pred_fallthru
        _
      %p1890 = scmp.le.s32.totalorder 2, %s18
      // Predicated region
      $region53: #{tpu_custom_call.1} parent=5 // pred_check
        %p1891 = pneg %p1890
      $region54: #{tpu_custom_call.1} parent=5 // pred_check_branch
        %1893 = sbr.rel (%p1891) target = $region56
      $region55: #{tpu_custom_call.1} parent=5 // pred_region
        %s1894 = ssub.s32 %s18, 2
        // Predicated region
        $region57: #{tpu_custom_call.1} parent=55 // pred_check
          %p1895 = pneg %p157
        $region58: #{tpu_custom_call.1} parent=55 // pred_check_branch
          %1897 = sbr.rel (%p1895) target = $region60
        $region59: #{tpu_custom_call.1} parent=55 // pred_region
          %s1898 = sand.u32 %s142, 1
          %s1899 = scalar_lea.sflag [#allocation5], %s1898
          %s1900 = sand.u32 %s142, 1
          %s1901 = smul.addr %s1900, 16
          %s1902 = scalar_lea.vmem [#allocation8], %s1901
          %1903 = dma.done %s1899, 256
        $region60: #{tpu_custom_call.1} parent=55 // pred_fallthru
          _
      $region56: #{tpu_custom_call.1} parent=5 // pred_fallthru
        _
    $region6: #{tpu_custom_call.1} parent=1 // loop_footer
      %s22 = sadd.s32 1, %s18
    $region7: #{tpu_custom_call.1} parent=1 // loop_footer_branch
      %17 = sbr.rel target = $region3
    $region8: #{tpu_custom_call.1} parent=1 // loop_exit
      _
    %1904 = vsyncpa [#allocation4], 1
    %s1905 = scalar_lea.sflag [#allocation4], 1
    %1906 = vsyncpa %s1905, 1
    %1907 = vsyncpa [#allocation7], 1
    %1908 = vsyncpa [#allocation5], 1
    %s1909 = scalar_lea.sflag [#allocation5], 1
    %1910 = vsyncpa %s1909, 1

</llo_original>
